<compile_context>
chip_gen: v5e
topology: v5e:2x2
jax: 0.10.0
libtpu: 0.0.40
codegen_flags: <defaults>
</compile_context>

<pallas_src>
import numpy as np
import jax
import jax.numpy as jnp
from jax.experimental import pallas as pl
from jax.experimental.pallas import tpu as pltpu

EPS = 1e-5                         # nn.LayerNorm default eps
VMEM_LIMIT = 32 * 1024 * 1024      # safe on v5e/v6e/v7x (<= physical on all gens)


# ------------------------------------------------------------------
# numpy glue: relative-position index & shifted-window attention mask
# ------------------------------------------------------------------
def relative_position_index(ws):
    coords = np.stack(np.meshgrid(np.arange(ws), np.arange(ws), indexing="ij"))
    cf = coords.reshape(2, -1)
    rel = cf[:, :, None] - cf[:, None, :]
    rel = rel.transpose(1, 2, 0).astype(np.int64)
    rel[:, :, 0] += ws - 1
    rel[:, :, 1] += ws - 1
    rel[:, :, 0] *= 2 * ws - 1
    return rel.sum(-1)  # (N, N)


def compute_attn_mask(H, W, ws, shift):
    Hp = int(np.ceil(H / ws)) * ws
    Wp = int(np.ceil(W / ws)) * ws
    img = np.zeros((1, Hp, Wp, 1), np.float32)
    slices = (slice(0, -ws), slice(-ws, -shift), slice(-shift, None))
    cnt = 0
    for hs in slices:
        for wsl in slices:
            img[:, hs, wsl, :] = cnt
            cnt += 1
    m = img.reshape(1, Hp // ws, ws, Wp // ws, ws, 1).transpose(0, 1, 3, 2, 4, 5)
    m = m.reshape(-1, ws * ws)                       # (nW, N)
    am = m[:, None, :] - m[:, :, None]               # (nW, N, N)
    return np.where(am != 0, -100.0, 0.0).astype(np.float32)


def window_partition_j(x, ws):
    B, H, W, C = x.shape
    x = x.reshape(B, H // ws, ws, W // ws, ws, C)
    return x.transpose(0, 1, 3, 2, 4, 5).reshape(B, (H // ws) * (W // ws), ws * ws, C)


def window_reverse_j(win, ws, H, W):
    B, nW, N, C = win.shape
    x = win.reshape(B, H // ws, W // ws, ws, ws, C)
    return x.transpose(0, 1, 3, 2, 4, 5).reshape(B, H, W, C)


def _pick_row_tile(R, cap=512):
    for t in (512, 256, 128, 64, 32, 16, 8):
        if t <= cap and R % t == 0:
            return t
    return R  # full-array block (always legal)


_SQRT_2_OVER_PI = 0.7978845608028654


def _gelu_tanh(x):
    # tanh-approx GELU (|err| vs exact erf GELU < ~1e-3, well inside tolerance);
    # jnp.tanh runs on the otherwise-idle EUP slot instead of a VALU erf poly.
    return 0.5 * x * (1.0 + jnp.tanh(_SQRT_2_OVER_PI * (x + 0.044715 * x * x * x)))


# ------------------------------------------------------------------
# Pallas kernel 1: LayerNorm over last dim (only used when spatial padding
# prevents fusing norm1 into the attention kernel)
# ------------------------------------------------------------------
def _ln_kernel(x_ref, g_ref, b_ref, o_ref):
    x = x_ref[...].astype(jnp.float32)
    mu = jnp.mean(x, axis=-1, keepdims=True)
    var = jnp.mean((x - mu) ** 2, axis=-1, keepdims=True)
    xn = (x - mu) * jax.lax.rsqrt(var + EPS)
    o_ref[...] = (xn * g_ref[...] + b_ref[...]).astype(o_ref.dtype)


def layernorm_pallas(x2d, gamma, beta):
    R, C = x2d.shape
    rt = _pick_row_tile(R)
    return pl.pallas_call(
        _ln_kernel,
        out_shape=jax.ShapeDtypeStruct((R, C), x2d.dtype),
        grid_spec=pltpu.PrefetchScalarGridSpec(
            num_scalar_prefetch=0,
            grid=(R // rt,),
            in_specs=[
                pl.BlockSpec((rt, C), lambda i: (i, 0)),
                pl.BlockSpec((1, C), lambda i: (0, 0)),
                pl.BlockSpec((1, C), lambda i: (0, 0)),
            ],
            out_specs=pl.BlockSpec((rt, C), lambda i: (i, 0)),
        ),
        compiler_params=pltpu.CompilerParams(
            dimension_semantics=("parallel",), vmem_limit_bytes=VMEM_LIMIT),
    )(x2d, gamma.reshape(1, C), beta.reshape(1, C))


# ------------------------------------------------------------------
# Pallas kernel 2: window multi-head attention, WT windows per grid step.
# Optionally fuses norm1 (when no spatial padding) and skips the shift mask
# entirely for non-shifted blocks.
# ------------------------------------------------------------------
def _make_window_attention_kernel(num_heads, N, C, scale, wt, fuse_ln, use_mask):
    hd = C // num_heads

    def kernel(*refs):
        refs = list(refs)
        x_ref = refs[0]
        idx = 1
        if fuse_ln:
            g_ref, b_ref = refs[idx], refs[idx + 1]
            idx += 2
        wqkv_ref, bqkv_ref, wproj_ref, bproj_ref, bias_ref = refs[idx:idx + 5]
        idx += 5
        mask_ref = None
        if use_mask:
            mask_ref = refs[idx]
            idx += 1
        o_ref = refs[idx]

        x = x_ref[...].astype(jnp.float32)                     # (wt, N, C)
        if fuse_ln:                                            # fused norm1
            mu = jnp.mean(x, axis=-1, keepdims=True)
            var = jnp.mean((x - mu) ** 2, axis=-1, keepdims=True)
            x = (x - mu) * jax.lax.rsqrt(var + EPS) * g_ref[...] + b_ref[...]

        # One big QKV matmul over all wt*N tokens in this step (bf16 -> f32 acc).
        x2 = x.reshape(wt * N, C)
        qkv = jnp.dot(x2.astype(jnp.bfloat16), wqkv_ref[...],
                      preferred_element_type=jnp.float32) + bqkv_ref[...]
        qkv = qkv.reshape(wt, N, 3 * C)

        # Per-head attention, batched over the wt windows.
        ctx_heads = []
        for h in range(num_heads):
            q = qkv[:, :, h * hd:(h + 1) * hd] * scale
            k = qkv[:, :, C + h * hd:C + (h + 1) * hd]
            v = qkv[:, :, 2 * C + h * hd:2 * C + (h + 1) * hd]
            s = jnp.einsum("wnd,wmd->wnm",
                           q.astype(jnp.bfloat16), k.astype(jnp.bfloat16),
                           preferred_element_type=jnp.float32)   # (wt, N, N)
            s = s + bias_ref[h]
            if use_mask:
                s = s + mask_ref[...]
            s = s - jnp.max(s, axis=-1, keepdims=True)
            p = jnp.exp(s)
            p = p * pl.reciprocal(jnp.sum(p, axis=-1, keepdims=True), approx=True)
            ctx_heads.append(
                jnp.einsum("wnm,wmd->wnd",
                           p.astype(jnp.bfloat16), v.astype(jnp.bfloat16),
                           preferred_element_type=jnp.float32))  # (wt, N, hd)

        ctx = jnp.concatenate(ctx_heads, axis=-1)                # (wt, N, C)
        # Single output projection over all tokens (K = C, not K = hd).
        out = jnp.dot(ctx.reshape(wt * N, C).astype(jnp.bfloat16), wproj_ref[...],
                      preferred_element_type=jnp.float32) + bproj_ref[...]
        o_ref[...] = out.reshape(wt, N, C).astype(o_ref.dtype)

    return kernel


def window_attention_pallas(xw, nW, wqkv, bqkv, wproj, bproj, rel_bias, mask,
                            num_heads, scale, gamma=None, beta=None):
    """xw: (B*nW, N, C) windows. mask: (nW, N, N) or None. gamma/beta: fuse norm1."""
    M, N, C = xw.shape
    use_mask = mask is not None
    fuse_ln = gamma is not None

    # Largest divisor of nW (hence of M) keeping <= 512 tokens per step.
    wt = 1
    for d in range(1, nW + 1):
        if nW % d == 0 and d * N <= 512 and M % d == 0:
            wt = d

    kernel = _make_window_attention_kernel(num_heads, N, C, scale, wt, fuse_ln, use_mask)

    in_specs = [pl.BlockSpec((wt, N, C), lambda i: (i, 0, 0))]
    inputs = [xw]
    if fuse_ln:
        in_specs += [pl.BlockSpec((1, 1, C), lambda i: (0, 0, 0)),
                     pl.BlockSpec((1, 1, C), lambda i: (0, 0, 0))]
        inputs += [gamma.reshape(1, 1, C), beta.reshape(1, 1, C)]
    in_specs += [
        pl.BlockSpec((C, 3 * C), lambda i: (0, 0)),
        pl.BlockSpec((1, 3 * C), lambda i: (0, 0)),
        pl.BlockSpec((C, C), lambda i: (0, 0)),
        pl.BlockSpec((1, C), lambda i: (0, 0)),
        pl.BlockSpec((num_heads, N, N), lambda i: (0, 0, 0)),
    ]
    inputs += [wqkv, bqkv.reshape(1, 3 * C), wproj, bproj.reshape(1, C), rel_bias]
    if use_mask:
        nb = max(nW // wt, 1)
        in_specs.append(pl.BlockSpec((wt, N, N), lambda i, nb=nb: (i % nb, 0, 0)))
        inputs.append(mask)

    return pl.pallas_call(
        kernel,
        out_shape=jax.ShapeDtypeStruct((M, N, C), xw.dtype),
        grid_spec=pltpu.PrefetchScalarGridSpec(
            num_scalar_prefetch=0,
            grid=(M // wt,),
            in_specs=in_specs,
            out_specs=pl.BlockSpec((wt, N, C), lambda i: (i, 0, 0)),
        ),
        compiler_params=pltpu.CompilerParams(
            dimension_semantics=("parallel",), vmem_limit_bytes=VMEM_LIMIT),
    )(*inputs)


# ------------------------------------------------------------------
# Pallas kernel 3: residual + norm2 + MLP (tanh GELU) + residual
# ------------------------------------------------------------------
def _res_mlp_kernel(s_ref, a_ref, g_ref, b_ref, w1_ref, b1_ref, w2_ref, b2_ref, o_ref):
    h = s_ref[...].astype(jnp.float32) + a_ref[...].astype(jnp.float32)
    mu = jnp.mean(h, axis=-1, keepdims=True)
    var = jnp.mean((h - mu) ** 2, axis=-1, keepdims=True)
    ln = (h - mu) * jax.lax.rsqrt(var + EPS) * g_ref[...] + b_ref[...]
    f1 = jnp.dot(ln.astype(jnp.bfloat16), w1_ref[...],
                 preferred_element_type=jnp.float32) + b1_ref[...]
    f1 = _gelu_tanh(f1)
    f2 = jnp.dot(f1.astype(jnp.bfloat16), w2_ref[...],
                 preferred_element_type=jnp.float32) + b2_ref[...]
    o_ref[...] = (h + f2).astype(o_ref.dtype)


def res_mlp_pallas(shortcut, attn_out, gamma, beta, w1, b1, w2, b2):
    R, C = shortcut.shape
    Hd = w1.shape[1]
    rt = _pick_row_tile(R)
    return pl.pallas_call(
        _res_mlp_kernel,
        out_shape=jax.ShapeDtypeStruct((R, C), shortcut.dtype),
        grid_spec=pltpu.PrefetchScalarGridSpec(
            num_scalar_prefetch=0,
            grid=(R // rt,),
            in_specs=[
                pl.BlockSpec((rt, C), lambda i: (i, 0)),
                pl.BlockSpec((rt, C), lambda i: (i, 0)),
                pl.BlockSpec((1, C), lambda i: (0, 0)),
                pl.BlockSpec((1, C), lambda i: (0, 0)),
                pl.BlockSpec((C, Hd), lambda i: (0, 0)),
                pl.BlockSpec((1, Hd), lambda i: (0, 0)),
                pl.BlockSpec((Hd, C), lambda i: (0, 0)),
                pl.BlockSpec((1, C), lambda i: (0, 0)),
            ],
            out_specs=pl.BlockSpec((rt, C), lambda i: (i, 0)),
        ),
        compiler_params=pltpu.CompilerParams(
            dimension_semantics=("parallel",), vmem_limit_bytes=VMEM_LIMIT),
    )(shortcut, attn_out, gamma.reshape(1, C), beta.reshape(1, C),
      w1, b1.reshape(1, Hd), w2, b2.reshape(1, C))


# ------------------------------------------------------------------
# Swin block + BasicLayer (Pallas version)
# ------------------------------------------------------------------
def swin_block_pallas(x, p, H, W, ws, shift, attn_mask, num_heads):
    B, L, C = x.shape
    hd = C // num_heads
    scale = hd ** (-0.5)
    shortcut2d = x.reshape(B * L, C)

    pad_b = (ws - H % ws) % ws
    pad_r = (ws - W % ws) % ws
    Hp, Wp = H + pad_b, W + pad_r
    nW = (Hp // ws) * (Wp // ws)

    fuse_ln = (pad_b == 0 and pad_r == 0)
    if fuse_ln:
        # LN commutes with roll & window partition -> apply it inside the kernel.
        xi = x.reshape(B, H, W, C)
    else:
        # TODO(synk): fusing norm1 under spatial padding would need in-kernel pad
        # masking; keep a standalone LN kernel on that (rare) path instead.
        xn = layernorm_pallas(shortcut2d, p["g1"], p["b1"]).reshape(B, H, W, C)
        xi = jnp.pad(xn, ((0, 0), (0, pad_b), (0, pad_r), (0, 0)))

    if shift > 0:
        xi = jnp.roll(xi, (-shift, -shift), axis=(1, 2))
        mask = attn_mask
    else:
        mask = None   # non-shifted blocks: no mask DMA, no mask adds

    xw = window_partition_j(xi, ws).reshape(B * nW, ws * ws, C)
    yw = window_attention_pallas(
        xw, nW, p["wqkv"], p["bqkv"], p["wproj"], p["bproj"],
        p["rel_bias"], mask, num_heads, scale,
        gamma=p["g1"] if fuse_ln else None,
        beta=p["b1"] if fuse_ln else None)
    ys = window_reverse_j(yw.reshape(B, nW, ws * ws, C), ws, Hp, Wp)

    if shift > 0:
        ys = jnp.roll(ys, (shift, shift), axis=(1, 2))
    attn_out = ys[:, :H, :W, :].reshape(B * L, C)

    out = res_mlp_pallas(shortcut2d, attn_out, p["g2"], p["b2"],
                         p["w1"], p["b1fc"], p["w2"], p["b2fc"])
    return out.reshape(B, L, C)


def basic_layer_pallas(x, H, W, block_params, ws, num_heads):
    shift = ws // 2
    attn_mask = jnp.asarray(compute_attn_mask(H, W, ws, shift))
    # Pre-cast the big weight matrices to bf16 once (MXU-native inputs, halves
    # weight DMA); biases / LN params / rel-pos bias stay f32.
    prepped = []
    for p in block_params:
        q = dict(p)
        for k in ("wqkv", "wproj", "w1", "w2"):
            q[k] = p[k].astype(jnp.bfloat16)
        prepped.append(q)
    for i, p in enumerate(prepped):
        s = 0 if i % 2 == 0 else shift
        x = swin_block_pallas(x, p, H, W, ws, s, attn_mask, num_heads)
    # downsample is None -> (x, H, W, x, H, W)
    return x, H, W, x, H, W


# ------------------------------------------------------------------
# Pure-JAX reference (mirrors the PyTorch forward) for validation
# ------------------------------------------------------------------
def _layernorm_ref(x, g, b):
    mu = jnp.mean(x, -1, keepdims=True)
    var = jnp.mean((x - mu) ** 2, -1, keepdims=True)
    return (x - mu) * jax.lax.rsqrt(var + EPS) * g + b


def _gelu_ref(x):
    return 0.5 * x * (1.0 + jax.lax.erf(x / np.float32(np.sqrt(2.0))))


def swin_block_ref(x, p, H, W, ws, shift, attn_mask, num_heads):
    B, L, C = x.shape
    hd = C // num_heads
    scale = hd ** (-0.5)
    shortcut = x
    xn = _layernorm_ref(x, p["g1"], p["b1"]).reshape(B, H, W, C)
    pad_b = (ws - H % ws) % ws
    pad_r = (ws - W % ws) % ws
    if pad_b or pad_r:
        xn = jnp.pad(xn, ((0, 0), (0, pad_b), (0, pad_r), (0, 0)))
    Hp, Wp = H + pad_b, W + pad_r
    if shift > 0:
        xs = jnp.roll(xn, (-shift, -shift), axis=(1, 2))
        mask = attn_mask
    else:
        xs = xn
        mask = jnp.zeros_like(attn_mask)
    xw = window_partition_j(xs, ws)
    _, nW, N, _ = xw.shape
    xf = xw.reshape(B * nW, N, C)
    qkv = xf @ p["wqkv"] + p["bqkv"]
    qkv = qkv.reshape(B * nW, N, 3, num_heads, hd).transpose(2, 0, 3, 1, 4)
    q, k, v = qkv[0] * scale, qkv[1], qkv[2]
    attn = jnp.einsum("bhnd,bhmd->bhnm", q, k)
    attn = attn + p["rel_bias"][None]
    attn = attn + jnp.tile(mask, (B, 1, 1))[:, None]
    attn = jax.nn.softmax(attn, axis=-1)
    ctx = jnp.einsum("bhnm,bhmd->bhnd", attn, v).transpose(0, 2, 1, 3).reshape(B * nW, N, C)
    y = ctx @ p["wproj"] + p["bproj"]
    ys = window_reverse_j(y.reshape(B, nW, N, C), ws, Hp, Wp)
    if shift > 0:
        ys = jnp.roll(ys, (shift, shift), axis=(1, 2))
    h = shortcut + ys[:, :H, :W, :].reshape(B, L, C)
    ln2 = _layernorm_ref(h, p["g2"], p["b2"])
    f = _gelu_ref(ln2 @ p["w1"] + p["b1fc"]) @ p["w2"] + p["b2fc"]
    return h + f


def basic_layer_ref(x, H, W, block_params, ws, num_heads):
    shift = ws // 2
    attn_mask = jnp.asarray(compute_attn_mask(H, W, ws, shift))
    for i, p in enumerate(block_params):
        s = 0 if i % 2 == 0 else shift
        x = swin_block_ref(x, p, H, W, ws, s, attn_mask, num_heads)
    return x, H, W, x, H, W


# ------------------------------------------------------------------
# Deterministic synthetic parameter init (shapes from the module __init__)
# ------------------------------------------------------------------
def init_block_params(key, C, num_heads, ws, mlp_ratio):
    N = ws * ws
    hidden = int(C * mlp_ratio)
    ks = jax.random.split(key, 13)
    nrm = lambda k, shape, std=0.02: std * jax.random.normal(k, shape, jnp.float32)
    table = nrm(ks[0], ((2 * ws - 1) ** 2, num_heads))           # rel-pos bias table
    rpi = relative_position_index(ws).reshape(-1)
    rel_bias = jnp.transpose(table[rpi].reshape(N, N, num_heads), (2, 0, 1))
    return dict(
        g1=1.0 + nrm(ks[1], (C,), 0.05), b1=nrm(ks[2], (C,), 0.05),
        wqkv=nrm(ks[3], (C, 3 * C)), bqkv=nrm(ks[4], (3 * C,)),
        wproj=nrm(ks[5], (C, C)), bproj=nrm(ks[6], (C,)),
        g2=1.0 + nrm(ks[7], (C,), 0.05), b2=nrm(ks[8], (C,), 0.05),
        w1=nrm(ks[9], (C, hidden)), b1fc=nrm(ks[10], (hidden,)),
        w2=nrm(ks[11], (hidden, C)), b2fc=nrm(ks[12], (C,)),
        rel_bias=rel_bias,
    )


# ------------------------------------------------------------------
if __name__ == "__main__":
    B, C, H, W = 2, 32, 8, 8
    depth, num_heads, ws, mlp_ratio = 2, 4, 4, 4.0

    key = jax.random.PRNGKey(0)
    kx, kp = jax.random.split(key)
    x = jax.random.normal(kx, (B, H * W, C), jnp.float32)
    block_params = [init_block_params(jax.random.fold_in(kp, i), C, num_heads, ws, mlp_ratio)
                    for i in range(depth)]

    out, H_o, W_o, out_down, Wh, Ww = basic_layer_pallas(x, H, W, block_params, ws, num_heads)
    out = jax.block_until_ready(out)

    ref, *_ = basic_layer_ref(x, H, W, block_params, ws, num_heads)
    err = float(jnp.max(jnp.abs(out - ref)))
    assert out.shape == (B, H * W, C) and (H_o, W_o, Wh, Ww) == (H, W, H, W)
    assert err < 2e-2, f"mismatch vs reference: {err}"
    print("KERNEL_OK")
</pallas_src>

<mosaic_0001>
module attributes {stable_mosaic.version = 11 : i64} {
  func.func @kernel(%arg0: i32, %arg1: memref<4x16x32xf32, #tpu.memory_space<vmem>>, %arg2: memref<1x1x32xf32, #tpu.memory_space<vmem>>, %arg3: memref<1x1x32xf32, #tpu.memory_space<vmem>>, %arg4: memref<32x96xbf16, #tpu.memory_space<vmem>>, %arg5: memref<1x96xf32, #tpu.memory_space<vmem>>, %arg6: memref<32x32xbf16, #tpu.memory_space<vmem>>, %arg7: memref<1x32xf32, #tpu.memory_space<vmem>>, %arg8: memref<4x16x16xf32, #tpu.memory_space<vmem>>, %arg9: memref<4x16x32xf32, #tpu.memory_space<vmem>>) attributes {dimension_semantics = [#tpu.dimension_semantics<parallel>], iteration_bounds = array<i64: 2>, scalar_prefetch = 0 : i64, scratch_operands = 0 : i64, tpu.core_type = #tpu.core_type<tc>, window_params = [{transform_indices = @transform_0, window_bounds = array<i64: 4, 16, 32>}, {pipeline_mode = #tpu.pipeline_mode<synchronous>, transform_indices = @transform_1, window_bounds = array<i64: 1, 1, 32>}, {pipeline_mode = #tpu.pipeline_mode<synchronous>, transform_indices = @transform_2, window_bounds = array<i64: 1, 1, 32>}, {pipeline_mode = #tpu.pipeline_mode<synchronous>, transform_indices = @transform_3, window_bounds = array<i64: 32, 96>}, {pipeline_mode = #tpu.pipeline_mode<synchronous>, transform_indices = @transform_4, window_bounds = array<i64: 1, 96>}, {pipeline_mode = #tpu.pipeline_mode<synchronous>, transform_indices = @transform_5, window_bounds = array<i64: 32, 32>}, {pipeline_mode = #tpu.pipeline_mode<synchronous>, transform_indices = @transform_6, window_bounds = array<i64: 1, 32>}, {pipeline_mode = #tpu.pipeline_mode<synchronous>, transform_indices = @transform_7, window_bounds = array<i64: 4, 16, 16>}, {transform_indices = @transform_8, window_bounds = array<i64: 4, 16, 32>}]} {
    %c0 = arith.constant 0 : index
    %c0_0 = arith.constant 0 : index
    %c0_1 = arith.constant 0 : index
    %0 = vector.load %arg1[%c0, %c0_0, %c0_1] : memref<4x16x32xf32, #tpu.memory_space<vmem>>, vector<4x16x32xf32>
    %cst = arith.constant dense<0.000000e+00> : vector<4x16xf32>
    %1 = vector.multi_reduction <add>, %0, %cst [2] : vector<4x16x32xf32> to vector<4x16xf32>
    %2 = vector.shape_cast %1 : vector<4x16xf32> to vector<4x16x1xf32>
    %cst_2 = arith.constant 3.200000e+01 : f32
    %3 = vector.broadcast %cst_2 : f32 to vector<4x16x1xf32>
    %4 = arith.divf %2, %3 : vector<4x16x1xf32>
    %5 = vector.broadcast %4 : vector<4x16x1xf32> to vector<4x16x32xf32>
    %6 = arith.subf %0, %5 : vector<4x16x32xf32>
    %7 = arith.mulf %6, %6 : vector<4x16x32xf32>
    %cst_3 = arith.constant dense<0.000000e+00> : vector<4x16xf32>
    %8 = vector.multi_reduction <add>, %7, %cst_3 [2] : vector<4x16x32xf32> to vector<4x16xf32>
    %9 = vector.shape_cast %8 : vector<4x16xf32> to vector<4x16x1xf32>
    %cst_4 = arith.constant 3.200000e+01 : f32
    %10 = vector.broadcast %cst_4 : f32 to vector<4x16x1xf32>
    %11 = arith.divf %9, %10 : vector<4x16x1xf32>
    %12 = vector.broadcast %4 : vector<4x16x1xf32> to vector<4x16x32xf32>
    %13 = arith.subf %0, %12 : vector<4x16x32xf32>
    %cst_5 = arith.constant 9.99999974E-6 : f32
    %14 = vector.broadcast %cst_5 : f32 to vector<4x16x1xf32>
    %15 = arith.addf %11, %14 : vector<4x16x1xf32>
    %16 = math.rsqrt %15 : vector<4x16x1xf32>
    %17 = vector.broadcast %16 : vector<4x16x1xf32> to vector<4x16x32xf32>
    %18 = arith.mulf %13, %17 : vector<4x16x32xf32>
    %c0_6 = arith.constant 0 : index
    %c0_7 = arith.constant 0 : index
    %c0_8 = arith.constant 0 : index
    %19 = vector.load %arg2[%c0_6, %c0_7, %c0_8] : memref<1x1x32xf32, #tpu.memory_space<vmem>>, vector<1x1x32xf32>
    %20 = vector.broadcast %19 : vector<1x1x32xf32> to vector<4x16x32xf32>
    %21 = arith.mulf %18, %20 : vector<4x16x32xf32>
    %c0_9 = arith.constant 0 : index
    %c0_10 = arith.constant 0 : index
    %c0_11 = arith.constant 0 : index
    %22 = vector.load %arg3[%c0_9, %c0_10, %c0_11] : memref<1x1x32xf32, #tpu.memory_space<vmem>>, vector<1x1x32xf32>
    %23 = vector.broadcast %22 : vector<1x1x32xf32> to vector<4x16x32xf32>
    %24 = arith.addf %21, %23 : vector<4x16x32xf32>
    %25 = vector.shape_cast %24 : vector<4x16x32xf32> to vector<64x32xf32>
    %26 = arith.truncf %25 : vector<64x32xf32> to vector<64x32xbf16>
    %c0_12 = arith.constant 0 : index
    %c0_13 = arith.constant 0 : index
    %27 = vector.load %arg4[%c0_12, %c0_13] : memref<32x96xbf16, #tpu.memory_space<vmem>>, vector<32x96xbf16>
    %cst_14 = arith.constant dense<0.000000e+00> : vector<64x96xf32>
    %28 = tpu.matmul %26, %27, %cst_14 {dimension_numbers = #tpu.dot_dimension_numbers<[1], [0], [0], [1], [0, 0, 1, 1], [], []>} : vector<64x32xbf16>, vector<32x96xbf16>, vector<64x96xf32> -> vector<64x96xf32>
    %c0_15 = arith.constant 0 : index
    %c0_16 = arith.constant 0 : index
    %29 = vector.load %arg5[%c0_15, %c0_16] : memref<1x96xf32, #tpu.memory_space<vmem>>, vector<1x96xf32>
    %30 = vector.broadcast %29 : vector<1x96xf32> to vector<64x96xf32>
    %31 = arith.addf %28, %30 : vector<64x96xf32>
    %32 = vector.shape_cast %31 : vector<64x96xf32> to vector<4x16x96xf32>
    %33 = vector.extract_strided_slice %32 {offsets = [0, 0, 0], sizes = [4, 16, 8], strides = [1, 1, 1]} : vector<4x16x96xf32> to vector<4x16x8xf32>
    %cst_17 = arith.constant 0.353553385 : f32
    %34 = vector.broadcast %cst_17 : f32 to vector<4x16x8xf32>
    %35 = arith.mulf %33, %34 : vector<4x16x8xf32>
    %36 = vector.extract_strided_slice %32 {offsets = [0, 0, 32], sizes = [4, 16, 8], strides = [1, 1, 1]} : vector<4x16x96xf32> to vector<4x16x8xf32>
    %37 = vector.extract_strided_slice %32 {offsets = [0, 0, 64], sizes = [4, 16, 8], strides = [1, 1, 1]} : vector<4x16x96xf32> to vector<4x16x8xf32>
    %38 = arith.truncf %35 : vector<4x16x8xf32> to vector<4x16x8xbf16>
    %39 = arith.truncf %36 : vector<4x16x8xf32> to vector<4x16x8xbf16>
    "tpu.trace_start"() <{level = 10 : i32, message = "wnd,wmd->wnm"}> : () -> ()
    %cst_18 = arith.constant dense<0.000000e+00> : vector<4x16x16xf32>
    %40 = tpu.matmul %38, %39, %cst_18 {dimension_numbers = #tpu.dot_dimension_numbers<[2], [2], [1], [1], [0, 0, 0, 1, 1, 1], [0], [0]>} : vector<4x16x8xbf16>, vector<4x16x8xbf16>, vector<4x16x16xf32> -> vector<4x16x16xf32>
    "tpu.trace_stop"() : () -> ()
    %c0_19 = arith.constant 0 : index
    %c0_20 = arith.constant 0 : index
    %c0_21 = arith.constant 0 : index
    %41 = vector.load %arg8[%c0_19, %c0_20, %c0_21] : memref<4x16x16xf32, #tpu.memory_space<vmem>>, vector<1x16x16xf32>
    %42 = vector.shape_cast %41 : vector<1x16x16xf32> to vector<16x16xf32>
    %43 = vector.shape_cast %42 : vector<16x16xf32> to vector<1x16x16xf32>
    %44 = vector.broadcast %43 : vector<1x16x16xf32> to vector<4x16x16xf32>
    %45 = arith.addf %40, %44 : vector<4x16x16xf32>
    %cst_22 = arith.constant dense<0xFF800000> : vector<4x16xf32>
    %46 = vector.multi_reduction <maximumf>, %45, %cst_22 [2] : vector<4x16x16xf32> to vector<4x16xf32>
    %47 = vector.shape_cast %46 : vector<4x16xf32> to vector<4x16x1xf32>
    %48 = vector.broadcast %47 : vector<4x16x1xf32> to vector<4x16x16xf32>
    %49 = arith.subf %45, %48 : vector<4x16x16xf32>
    %50 = math.exp %49 : vector<4x16x16xf32>
    %cst_23 = arith.constant dense<0.000000e+00> : vector<4x16xf32>
    %51 = vector.multi_reduction <add>, %50, %cst_23 [2] : vector<4x16x16xf32> to vector<4x16xf32>
    %52 = vector.shape_cast %51 : vector<4x16xf32> to vector<4x16x1xf32>
    %53 = tpu.reciprocal %52 {approx = true} : vector<4x16x1xf32> -> vector<4x16x1xf32>
    %54 = vector.broadcast %53 : vector<4x16x1xf32> to vector<4x16x16xf32>
    %55 = arith.mulf %50, %54 : vector<4x16x16xf32>
    %56 = arith.truncf %55 : vector<4x16x16xf32> to vector<4x16x16xbf16>
    %57 = arith.truncf %37 : vector<4x16x8xf32> to vector<4x16x8xbf16>
    "tpu.trace_start"() <{level = 10 : i32, message = "wnm,wmd->wnd"}> : () -> ()
    %cst_24 = arith.constant dense<0.000000e+00> : vector<4x16x8xf32>
    %58 = tpu.matmul %56, %57, %cst_24 {dimension_numbers = #tpu.dot_dimension_numbers<[2], [1], [1], [2], [0, 0, 0, 1, 1, 2], [0], [0]>} : vector<4x16x16xbf16>, vector<4x16x8xbf16>, vector<4x16x8xf32> -> vector<4x16x8xf32>
    "tpu.trace_stop"() : () -> ()
    %59 = vector.extract_strided_slice %32 {offsets = [0, 0, 8], sizes = [4, 16, 8], strides = [1, 1, 1]} : vector<4x16x96xf32> to vector<4x16x8xf32>
    %cst_25 = arith.constant 0.353553385 : f32
    %60 = vector.broadcast %cst_25 : f32 to vector<4x16x8xf32>
    %61 = arith.mulf %59, %60 : vector<4x16x8xf32>
    %62 = vector.extract_strided_slice %32 {offsets = [0, 0, 40], sizes = [4, 16, 8], strides = [1, 1, 1]} : vector<4x16x96xf32> to vector<4x16x8xf32>
    %63 = vector.extract_strided_slice %32 {offsets = [0, 0, 72], sizes = [4, 16, 8], strides = [1, 1, 1]} : vector<4x16x96xf32> to vector<4x16x8xf32>
    %64 = arith.truncf %61 : vector<4x16x8xf32> to vector<4x16x8xbf16>
    %65 = arith.truncf %62 : vector<4x16x8xf32> to vector<4x16x8xbf16>
    "tpu.trace_start"() <{level = 10 : i32, message = "wnd,wmd->wnm"}> : () -> ()
    %cst_26 = arith.constant dense<0.000000e+00> : vector<4x16x16xf32>
    %66 = tpu.matmul %64, %65, %cst_26 {dimension_numbers = #tpu.dot_dimension_numbers<[2], [2], [1], [1], [0, 0, 0, 1, 1, 1], [0], [0]>} : vector<4x16x8xbf16>, vector<4x16x8xbf16>, vector<4x16x16xf32> -> vector<4x16x16xf32>
    "tpu.trace_stop"() : () -> ()
    %c1 = arith.constant 1 : index
    %c0_27 = arith.constant 0 : index
    %c0_28 = arith.constant 0 : index
    %67 = vector.load %arg8[%c1, %c0_27, %c0_28] : memref<4x16x16xf32, #tpu.memory_space<vmem>>, vector<1x16x16xf32>
    %68 = vector.shape_cast %67 : vector<1x16x16xf32> to vector<16x16xf32>
    %69 = vector.shape_cast %68 : vector<16x16xf32> to vector<1x16x16xf32>
    %70 = vector.broadcast %69 : vector<1x16x16xf32> to vector<4x16x16xf32>
    %71 = arith.addf %66, %70 : vector<4x16x16xf32>
    %cst_29 = arith.constant dense<0xFF800000> : vector<4x16xf32>
    %72 = vector.multi_reduction <maximumf>, %71, %cst_29 [2] : vector<4x16x16xf32> to vector<4x16xf32>
    %73 = vector.shape_cast %72 : vector<4x16xf32> to vector<4x16x1xf32>
    %74 = vector.broadcast %73 : vector<4x16x1xf32> to vector<4x16x16xf32>
    %75 = arith.subf %71, %74 : vector<4x16x16xf32>
    %76 = math.exp %75 : vector<4x16x16xf32>
    %cst_30 = arith.constant dense<0.000000e+00> : vector<4x16xf32>
    %77 = vector.multi_reduction <add>, %76, %cst_30 [2] : vector<4x16x16xf32> to vector<4x16xf32>
    %78 = vector.shape_cast %77 : vector<4x16xf32> to vector<4x16x1xf32>
    %79 = tpu.reciprocal %78 {approx = true} : vector<4x16x1xf32> -> vector<4x16x1xf32>
    %80 = vector.broadcast %79 : vector<4x16x1xf32> to vector<4x16x16xf32>
    %81 = arith.mulf %76, %80 : vector<4x16x16xf32>
    %82 = arith.truncf %81 : vector<4x16x16xf32> to vector<4x16x16xbf16>
    %83 = arith.truncf %63 : vector<4x16x8xf32> to vector<4x16x8xbf16>
    "tpu.trace_start"() <{level = 10 : i32, message = "wnm,wmd->wnd"}> : () -> ()
    %cst_31 = arith.constant dense<0.000000e+00> : vector<4x16x8xf32>
    %84 = tpu.matmul %82, %83, %cst_31 {dimension_numbers = #tpu.dot_dimension_numbers<[2], [1], [1], [2], [0, 0, 0, 1, 1, 2], [0], [0]>} : vector<4x16x16xbf16>, vector<4x16x8xbf16>, vector<4x16x8xf32> -> vector<4x16x8xf32>
    "tpu.trace_stop"() : () -> ()
    %85 = vector.extract_strided_slice %32 {offsets = [0, 0, 16], sizes = [4, 16, 8], strides = [1, 1, 1]} : vector<4x16x96xf32> to vector<4x16x8xf32>
    %cst_32 = arith.constant 0.353553385 : f32
    %86 = vector.broadcast %cst_32 : f32 to vector<4x16x8xf32>
    %87 = arith.mulf %85, %86 : vector<4x16x8xf32>
    %88 = vector.extract_strided_slice %32 {offsets = [0, 0, 48], sizes = [4, 16, 8], strides = [1, 1, 1]} : vector<4x16x96xf32> to vector<4x16x8xf32>
    %89 = vector.extract_strided_slice %32 {offsets = [0, 0, 80], sizes = [4, 16, 8], strides = [1, 1, 1]} : vector<4x16x96xf32> to vector<4x16x8xf32>
    %90 = arith.truncf %87 : vector<4x16x8xf32> to vector<4x16x8xbf16>
    %91 = arith.truncf %88 : vector<4x16x8xf32> to vector<4x16x8xbf16>
    "tpu.trace_start"() <{level = 10 : i32, message = "wnd,wmd->wnm"}> : () -> ()
    %cst_33 = arith.constant dense<0.000000e+00> : vector<4x16x16xf32>
    %92 = tpu.matmul %90, %91, %cst_33 {dimension_numbers = #tpu.dot_dimension_numbers<[2], [2], [1], [1], [0, 0, 0, 1, 1, 1], [0], [0]>} : vector<4x16x8xbf16>, vector<4x16x8xbf16>, vector<4x16x16xf32> -> vector<4x16x16xf32>
    "tpu.trace_stop"() : () -> ()
    %c2 = arith.constant 2 : index
    %c0_34 = arith.constant 0 : index
    %c0_35 = arith.constant 0 : index
    %93 = vector.load %arg8[%c2, %c0_34, %c0_35] : memref<4x16x16xf32, #tpu.memory_space<vmem>>, vector<1x16x16xf32>
    %94 = vector.shape_cast %93 : vector<1x16x16xf32> to vector<16x16xf32>
    %95 = vector.shape_cast %94 : vector<16x16xf32> to vector<1x16x16xf32>
    %96 = vector.broadcast %95 : vector<1x16x16xf32> to vector<4x16x16xf32>
    %97 = arith.addf %92, %96 : vector<4x16x16xf32>
    %cst_36 = arith.constant dense<0xFF800000> : vector<4x16xf32>
    %98 = vector.multi_reduction <maximumf>, %97, %cst_36 [2] : vector<4x16x16xf32> to vector<4x16xf32>
    %99 = vector.shape_cast %98 : vector<4x16xf32> to vector<4x16x1xf32>
    %100 = vector.broadcast %99 : vector<4x16x1xf32> to vector<4x16x16xf32>
    %101 = arith.subf %97, %100 : vector<4x16x16xf32>
    %102 = math.exp %101 : vector<4x16x16xf32>
    %cst_37 = arith.constant dense<0.000000e+00> : vector<4x16xf32>
    %103 = vector.multi_reduction <add>, %102, %cst_37 [2] : vector<4x16x16xf32> to vector<4x16xf32>
    %104 = vector.shape_cast %103 : vector<4x16xf32> to vector<4x16x1xf32>
    %105 = tpu.reciprocal %104 {approx = true} : vector<4x16x1xf32> -> vector<4x16x1xf32>
    %106 = vector.broadcast %105 : vector<4x16x1xf32> to vector<4x16x16xf32>
    %107 = arith.mulf %102, %106 : vector<4x16x16xf32>
    %108 = arith.truncf %107 : vector<4x16x16xf32> to vector<4x16x16xbf16>
    %109 = arith.truncf %89 : vector<4x16x8xf32> to vector<4x16x8xbf16>
    "tpu.trace_start"() <{level = 10 : i32, message = "wnm,wmd->wnd"}> : () -> ()
    %cst_38 = arith.constant dense<0.000000e+00> : vector<4x16x8xf32>
    %110 = tpu.matmul %108, %109, %cst_38 {dimension_numbers = #tpu.dot_dimension_numbers<[2], [1], [1], [2], [0, 0, 0, 1, 1, 2], [0], [0]>} : vector<4x16x16xbf16>, vector<4x16x8xbf16>, vector<4x16x8xf32> -> vector<4x16x8xf32>
    "tpu.trace_stop"() : () -> ()
    %111 = vector.extract_strided_slice %32 {offsets = [0, 0, 24], sizes = [4, 16, 8], strides = [1, 1, 1]} : vector<4x16x96xf32> to vector<4x16x8xf32>
    %cst_39 = arith.constant 0.353553385 : f32
    %112 = vector.broadcast %cst_39 : f32 to vector<4x16x8xf32>
    %113 = arith.mulf %111, %112 : vector<4x16x8xf32>
    %114 = vector.extract_strided_slice %32 {offsets = [0, 0, 56], sizes = [4, 16, 8], strides = [1, 1, 1]} : vector<4x16x96xf32> to vector<4x16x8xf32>
    %115 = vector.extract_strided_slice %32 {offsets = [0, 0, 88], sizes = [4, 16, 8], strides = [1, 1, 1]} : vector<4x16x96xf32> to vector<4x16x8xf32>
    %116 = arith.truncf %113 : vector<4x16x8xf32> to vector<4x16x8xbf16>
    %117 = arith.truncf %114 : vector<4x16x8xf32> to vector<4x16x8xbf16>
    "tpu.trace_start"() <{level = 10 : i32, message = "wnd,wmd->wnm"}> : () -> ()
    %cst_40 = arith.constant dense<0.000000e+00> : vector<4x16x16xf32>
    %118 = tpu.matmul %116, %117, %cst_40 {dimension_numbers = #tpu.dot_dimension_numbers<[2], [2], [1], [1], [0, 0, 0, 1, 1, 1], [0], [0]>} : vector<4x16x8xbf16>, vector<4x16x8xbf16>, vector<4x16x16xf32> -> vector<4x16x16xf32>
    "tpu.trace_stop"() : () -> ()
    %c3 = arith.constant 3 : index
    %c0_41 = arith.constant 0 : index
    %c0_42 = arith.constant 0 : index
    %119 = vector.load %arg8[%c3, %c0_41, %c0_42] : memref<4x16x16xf32, #tpu.memory_space<vmem>>, vector<1x16x16xf32>
    %120 = vector.shape_cast %119 : vector<1x16x16xf32> to vector<16x16xf32>
    %121 = vector.shape_cast %120 : vector<16x16xf32> to vector<1x16x16xf32>
    %122 = vector.broadcast %121 : vector<1x16x16xf32> to vector<4x16x16xf32>
    %123 = arith.addf %118, %122 : vector<4x16x16xf32>
    %cst_43 = arith.constant dense<0xFF800000> : vector<4x16xf32>
    %124 = vector.multi_reduction <maximumf>, %123, %cst_43 [2] : vector<4x16x16xf32> to vector<4x16xf32>
    %125 = vector.shape_cast %124 : vector<4x16xf32> to vector<4x16x1xf32>
    %126 = vector.broadcast %125 : vector<4x16x1xf32> to vector<4x16x16xf32>
    %127 = arith.subf %123, %126 : vector<4x16x16xf32>
    %128 = math.exp %127 : vector<4x16x16xf32>
    %cst_44 = arith.constant dense<0.000000e+00> : vector<4x16xf32>
    %129 = vector.multi_reduction <add>, %128, %cst_44 [2] : vector<4x16x16xf32> to vector<4x16xf32>
    %130 = vector.shape_cast %129 : vector<4x16xf32> to vector<4x16x1xf32>
    %131 = tpu.reciprocal %130 {approx = true} : vector<4x16x1xf32> -> vector<4x16x1xf32>
    %132 = vector.broadcast %131 : vector<4x16x1xf32> to vector<4x16x16xf32>
    %133 = arith.mulf %128, %132 : vector<4x16x16xf32>
    %134 = arith.truncf %133 : vector<4x16x16xf32> to vector<4x16x16xbf16>
    %135 = arith.truncf %115 : vector<4x16x8xf32> to vector<4x16x8xbf16>
    "tpu.trace_start"() <{level = 10 : i32, message = "wnm,wmd->wnd"}> : () -> ()
    %cst_45 = arith.constant dense<0.000000e+00> : vector<4x16x8xf32>
    %136 = tpu.matmul %134, %135, %cst_45 {dimension_numbers = #tpu.dot_dimension_numbers<[2], [1], [1], [2], [0, 0, 0, 1, 1, 2], [0], [0]>} : vector<4x16x16xbf16>, vector<4x16x8xbf16>, vector<4x16x8xf32> -> vector<4x16x8xf32>
    "tpu.trace_stop"() : () -> ()
    %137 = tpu.concatenate %58, %84, %110, %136 in 2 : vector<4x16x8xf32>, vector<4x16x8xf32>, vector<4x16x8xf32>, vector<4x16x8xf32> -> vector<4x16x32xf32>
    %138 = vector.shape_cast %137 : vector<4x16x32xf32> to vector<64x32xf32>
    %139 = arith.truncf %138 : vector<64x32xf32> to vector<64x32xbf16>
    %c0_46 = arith.constant 0 : index
    %c0_47 = arith.constant 0 : index
    %140 = vector.load %arg6[%c0_46, %c0_47] : memref<32x32xbf16, #tpu.memory_space<vmem>>, vector<32x32xbf16>
    %cst_48 = arith.constant dense<0.000000e+00> : vector<64x32xf32>
    %141 = tpu.matmul %139, %140, %cst_48 {dimension_numbers = #tpu.dot_dimension_numbers<[1], [0], [0], [1], [0, 0, 1, 1], [], []>} : vector<64x32xbf16>, vector<32x32xbf16>, vector<64x32xf32> -> vector<64x32xf32>
    %c0_49 = arith.constant 0 : index
    %c0_50 = arith.constant 0 : index
    %142 = vector.load %arg7[%c0_49, %c0_50] : memref<1x32xf32, #tpu.memory_space<vmem>>, vector<1x32xf32>
    %143 = vector.broadcast %142 : vector<1x32xf32> to vector<64x32xf32>
    %144 = arith.addf %141, %143 : vector<64x32xf32>
    %145 = vector.shape_cast %144 : vector<64x32xf32> to vector<4x16x32xf32>
    %c0_51 = arith.constant 0 : index
    %c0_52 = arith.constant 0 : index
    %c0_53 = arith.constant 0 : index
    %146 = vector.load %arg9[%c0_51, %c0_52, %c0_53] : memref<4x16x32xf32, #tpu.memory_space<vmem>>, vector<4x16x32xf32>
    tpu.vector_store %arg9[%c0_51, %c0_52, %c0_53], %145 {strides = array<i32>} : memref<4x16x32xf32, #tpu.memory_space<vmem>>, vector<4x16x32xf32>,
    return
  }
  func.func @transform_0(%arg0: i32) -> (i32, i32, i32) {
    %c0_i32 = arith.constant 0 : i32
    %c0_i32_0 = arith.constant 0 : i32
    %c0_i32_1 = arith.constant 0 : i32
    return %arg0, %c0_i32, %c0_i32_0 : i32, i32, i32
  }
  func.func @transform_1(%arg0: i32) -> (i32, i32, i32) {
    %c0_i32 = arith.constant 0 : i32
    %c0_i32_0 = arith.constant 0 : i32
    %c0_i32_1 = arith.constant 0 : i32
    %c0_i32_2 = arith.constant 0 : i32
    return %c0_i32, %c0_i32_0, %c0_i32_1 : i32, i32, i32
  }
  func.func @transform_2(%arg0: i32) -> (i32, i32, i32) {
    %c0_i32 = arith.constant 0 : i32
    %c0_i32_0 = arith.constant 0 : i32
    %c0_i32_1 = arith.constant 0 : i32
    %c0_i32_2 = arith.constant 0 : i32
    return %c0_i32, %c0_i32_0, %c0_i32_1 : i32, i32, i32
  }
  func.func @transform_3(%arg0: i32) -> (i32, i32) {
    %c0_i32 = arith.constant 0 : i32
    %c0_i32_0 = arith.constant 0 : i32
    %c0_i32_1 = arith.constant 0 : i32
    return %c0_i32, %c0_i32_0 : i32, i32
  }
  func.func @transform_4(%arg0: i32) -> (i32, i32) {
    %c0_i32 = arith.constant 0 : i32
    %c0_i32_0 = arith.constant 0 : i32
    %c0_i32_1 = arith.constant 0 : i32
    return %c0_i32, %c0_i32_0 : i32, i32
  }
  func.func @transform_5(%arg0: i32) -> (i32, i32) {
    %c0_i32 = arith.constant 0 : i32
    %c0_i32_0 = arith.constant 0 : i32
    %c0_i32_1 = arith.constant 0 : i32
    return %c0_i32, %c0_i32_0 : i32, i32
  }
  func.func @transform_6(%arg0: i32) -> (i32, i32) {
    %c0_i32 = arith.constant 0 : i32
    %c0_i32_0 = arith.constant 0 : i32
    %c0_i32_1 = arith.constant 0 : i32
    return %c0_i32, %c0_i32_0 : i32, i32
  }
  func.func @transform_7(%arg0: i32) -> (i32, i32, i32) {
    %c0_i32 = arith.constant 0 : i32
    %c0_i32_0 = arith.constant 0 : i32
    %c0_i32_1 = arith.constant 0 : i32
    %c0_i32_2 = arith.constant 0 : i32
    return %c0_i32, %c0_i32_0, %c0_i32_1 : i32, i32, i32
  }
  func.func @transform_8(%arg0: i32) -> (i32, i32, i32) {
    %c0_i32 = arith.constant 0 : i32
    %c0_i32_0 = arith.constant 0 : i32
    %c0_i32_1 = arith.constant 0 : i32
    return %arg0, %c0_i32, %c0_i32_0 : i32, i32, i32
  }
}

</mosaic_0001>

<llo_original>
// kernel: tpu_custom_call.1
$region0: #{tpu_custom_call.1}
  #allocation0 [shape = 'u32[]', space=smem, size = 0x4, offset = 0x4, fixed_abs, tag = 'smem constant byte address 0x4 - core index']
  #allocation1 [shape = 'u32[72,128]{1,0:T(1,128)}', space=vmem, size = 0x9000, scoped, tag = 'internal scratch']
  %s0 = inlined_call_operand.hbm [shape: f32[8,16,32], index: 0, kind: input, shape index: {}]
  %s1 = inlined_call_operand.hbm [shape: f32[1,1,32], index: 1, kind: input, shape index: {}]
  %s2 = inlined_call_operand.vmem [shape: f32[1,1,32], index: 2, kind: input, shape index: {}]
  %s3 = inlined_call_operand.hbm [shape: bf16[32,96], index: 3, kind: input, shape index: {}]
  %s4 = inlined_call_operand.vmem [shape: f32[1,96], index: 4, kind: input, shape index: {}]
  %s5 = inlined_call_operand.hbm [shape: bf16[32,32], index: 5, kind: input, shape index: {}]
  %s6 = inlined_call_operand.vmem [shape: f32[1,32], index: 6, kind: input, shape index: {}]
  %s7 = inlined_call_operand.hbm [shape: f32[4,16,16], index: 7, kind: input, shape index: {}]
  %s8 = inlined_call_operand.hbm [shape: f32[8,16,32], index: 8, kind: output, shape index: {}]
  %s9 = sld [smem:[#allocation0]]
  $region85: #{tpu_custom_call.1} parent=0
    _
  %s11 = ssub.s32 1, %s9
  %s12 = scalar_select 0, %s11, %s9
  $region1: #{tpu_custom_call.1} parent=0
    #allocation2 [shape = 'u8[65536]{0}', space=vmem, size = 0x10000, scoped, tag = 'input window, operand 0']
    #allocation3 [shape = 's32[2]{0}', space=sflag, size = 0x8, scoped, tag = 'scoped memory for tpu_custom_call.1']
    #allocation4 [shape = 's32[2]{0}', space=sflag, size = 0x8, scoped, tag = 'scoped memory for tpu_custom_call.1']
    #allocation5 [shape = 'u8[512]{0}', space=vmem, size = 0x400, scoped, tag = 'input window, operand 1, single buffered']
    #allocation6 [shape = 's32[1]{0}', space=sflag, size = 0x4, scoped, tag = 'scoped memory for tpu_custom_call.1']
    #allocation7 [shape = 'u8[8192]{0}', space=vmem, size = 0x2000, scoped, tag = 'input window, operand 3, single buffered']
    #allocation8 [shape = 'u8[8192]{0}', space=vmem, size = 0x2000, scoped, tag = 'input window, operand 5, single buffered']
    #allocation9 [shape = 's32[1]{0}', space=sflag, size = 0x4, scoped, tag = 'scoped memory for tpu_custom_call.1']
    #allocation10 [shape = 'u8[32768]{0}', space=vmem, size = 0x8000, scoped, tag = 'input window, operand 7, single buffered']
    #allocation11 [shape = 'u8[65536]{0}', space=vmem, size = 0x10000, scoped, tag = 'output window, operand 0']
    %13 = vsyncpa [#allocation3], 0
    %s14 = scalar_lea.sflag [#allocation3], 1
    %15 = vsyncpa %s14, 0
    %16 = vsyncpa [#allocation6], 0
    %17 = vsyncpa [#allocation9], 0
    %18 = vsyncpa [#allocation4], 0
    %s19 = scalar_lea.sflag [#allocation4], 1
    %20 = vsyncpa %s19, 0
    loop: start=0, step=1, limit=4
    $region2: #{tpu_custom_call.1} parent=1 // loop_pre_header
      _
    $region3: #{tpu_custom_call.1} parent=1 // loop_header
      %s22 = sphi 0, %s26
      %p23 = scmp.ge.s32.totalorder %s22, 4
      %s32 = sphi 0, %s34
      %s35 = sphi 0, %s32
      %s36 = sphi 0, %s35
      %s52 = sphi 0, %s36
      %s56 = sphi 0, %s56
      %s58 = sphi 0, %s56
      %s59 = sphi 0, %s58
      %s73 = sphi 0, %s59
      %s77 = sphi 0, %s77
      %s79 = sphi 0, %s77
      %s80 = sphi 0, %s79
      %s94 = sphi 0, %s80
      %s98 = sphi 0, %s98
      %s100 = sphi 0, %s98
      %s101 = sphi 0, %s100
      %s115 = sphi 0, %s101
      %s119 = sphi 0, %s119
      %s121 = sphi 0, %s119
      %s122 = sphi 0, %s121
      %s136 = sphi 0, %s122
      %s140 = sphi 0, %s140
      %s142 = sphi 0, %s140
      %s143 = sphi 0, %s142
      %s157 = sphi 0, %s143
      %s161 = sphi 0, %s161
      %s163 = sphi 0, %s161
      %s164 = sphi 0, %s163
      %s178 = sphi 0, %s164
      %s182 = sphi 0, %s182
      %s184 = sphi 0, %s182
      %s185 = sphi 0, %s184
      %s199 = sphi 0, %s185
      %s205 = sphi 0, %s207
      %s208 = sphi 0, %s205
      %s209 = sphi 0, %s208
      %s225 = sphi 0, %s209
    $region4: #{tpu_custom_call.1} parent=1 // loop_header_branch
      %25 = sbr.rel (%p23) target = $region8
    $region5: #{tpu_custom_call.1} parent=1 // loop_body
      %s27 = ssub.s32 %s22, 1
      %s28 = ssub.s32 %s22, 2
      %s29 = sadd.s32 %s22, 1
      %s30 = ssub.s32 %s22, %s29
      %p31 = scmp.eq.s32.totalorder %s30, 0
      %s33 = sadd.s32 %s32, 1
      %s34 = scalar_select %p31, %s32, %s33
      %p37 = pneg %p31
      %p38 = scmp.eq.s32.totalorder %s22, 1
      %p39 = por %p37, %p38
      %p40 = scmp.ne.s32.totalorder %s32, %s35
      %p41 = scmp.eq.s32.totalorder %s22, 0
      %p42 = por %p40, %p41
      %p43 = scmp.ne.s32.totalorder %s32, %s35
      %p44 = scmp.eq.s32.totalorder %s27, 1
      %p45 = por %p43, %p44
      %p46 = scmp.ne.s32.totalorder %s35, %s36
      %p47 = scmp.eq.s32.totalorder %s27, 0
      %p48 = por %p46, %p47
      %p49 = scmp.ne.s32.totalorder %s35, %s36
      %p50 = scmp.eq.s32.totalorder %s28, 1
      %p51 = por %p49, %p50
      %p53 = scmp.ne.s32.totalorder %s36, %s52
      %p54 = scmp.eq.s32.totalorder %s28, 0
      %p55 = por %p53, %p54
      %s57 = sadd.s32 %s56, 1
      %p60 = scmp.eq.s32.totalorder %s22, 1
      %p61 = scmp.ne.s32.totalorder %s56, %s58
      %p62 = scmp.eq.s32.totalorder %s22, 0
      %p63 = por %p61, %p62
      %p64 = scmp.ne.s32.totalorder %s56, %s58
      %p65 = scmp.eq.s32.totalorder %s27, 1
      %p66 = por %p64, %p65
      %p67 = scmp.ne.s32.totalorder %s58, %s59
      %p68 = scmp.eq.s32.totalorder %s27, 0
      %p69 = por %p67, %p68
      %p70 = scmp.ne.s32.totalorder %s58, %s59
      %p71 = scmp.eq.s32.totalorder %s28, 1
      %p72 = por %p70, %p71
      %p74 = scmp.ne.s32.totalorder %s59, %s73
      %p75 = scmp.eq.s32.totalorder %s28, 0
      %p76 = por %p74, %p75
      %s78 = sadd.s32 %s77, 1
      %p81 = scmp.eq.s32.totalorder %s22, 1
      %p82 = scmp.ne.s32.totalorder %s77, %s79
      %p83 = scmp.eq.s32.totalorder %s22, 0
      %p84 = por %p82, %p83
      %p85 = scmp.ne.s32.totalorder %s77, %s79
      %p86 = scmp.eq.s32.totalorder %s27, 1
      %p87 = por %p85, %p86
      %p88 = scmp.ne.s32.totalorder %s79, %s80
      %p89 = scmp.eq.s32.totalorder %s27, 0
      %p90 = por %p88, %p89
      %p91 = scmp.ne.s32.totalorder %s79, %s80
      %p92 = scmp.eq.s32.totalorder %s28, 1
      %p93 = por %p91, %p92
      %p95 = scmp.ne.s32.totalorder %s80, %s94
      %p96 = scmp.eq.s32.totalorder %s28, 0
      %p97 = por %p95, %p96
      %s99 = sadd.s32 %s98, 1
      %p102 = scmp.eq.s32.totalorder %s22, 1
      %p103 = scmp.ne.s32.totalorder %s98, %s100
      %p104 = scmp.eq.s32.totalorder %s22, 0
      %p105 = por %p103, %p104
      %p106 = scmp.ne.s32.totalorder %s98, %s100
      %p107 = scmp.eq.s32.totalorder %s27, 1
      %p108 = por %p106, %p107
      %p109 = scmp.ne.s32.totalorder %s100, %s101
      %p110 = scmp.eq.s32.totalorder %s27, 0
      %p111 = por %p109, %p110
      %p112 = scmp.ne.s32.totalorder %s100, %s101
      %p113 = scmp.eq.s32.totalorder %s28, 1
      %p114 = por %p112, %p113
      %p116 = scmp.ne.s32.totalorder %s101, %s115
      %p117 = scmp.eq.s32.totalorder %s28, 0
      %p118 = por %p116, %p117
      %s120 = sadd.s32 %s119, 1
      %p123 = scmp.eq.s32.totalorder %s22, 1
      %p124 = scmp.ne.s32.totalorder %s119, %s121
      %p125 = scmp.eq.s32.totalorder %s22, 0
      %p126 = por %p124, %p125
      %p127 = scmp.ne.s32.totalorder %s119, %s121
      %p128 = scmp.eq.s32.totalorder %s27, 1
      %p129 = por %p127, %p128
      %p130 = scmp.ne.s32.totalorder %s121, %s122
      %p131 = scmp.eq.s32.totalorder %s27, 0
      %p132 = por %p130, %p131
      %p133 = scmp.ne.s32.totalorder %s121, %s122
      %p134 = scmp.eq.s32.totalorder %s28, 1
      %p135 = por %p133, %p134
      %p137 = scmp.ne.s32.totalorder %s122, %s136
      %p138 = scmp.eq.s32.totalorder %s28, 0
      %p139 = por %p137, %p138
      %s141 = sadd.s32 %s140, 1
      %p144 = scmp.eq.s32.totalorder %s22, 1
      %p145 = scmp.ne.s32.totalorder %s140, %s142
      %p146 = scmp.eq.s32.totalorder %s22, 0
      %p147 = por %p145, %p146
      %p148 = scmp.ne.s32.totalorder %s140, %s142
      %p149 = scmp.eq.s32.totalorder %s27, 1
      %p150 = por %p148, %p149
      %p151 = scmp.ne.s32.totalorder %s142, %s143
      %p152 = scmp.eq.s32.totalorder %s27, 0
      %p153 = por %p151, %p152
      %p154 = scmp.ne.s32.totalorder %s142, %s143
      %p155 = scmp.eq.s32.totalorder %s28, 1
      %p156 = por %p154, %p155
      %p158 = scmp.ne.s32.totalorder %s143, %s157
      %p159 = scmp.eq.s32.totalorder %s28, 0
      %p160 = por %p158, %p159
      %s162 = sadd.s32 %s161, 1
      %p165 = scmp.eq.s32.totalorder %s22, 1
      %p166 = scmp.ne.s32.totalorder %s161, %s163
      %p167 = scmp.eq.s32.totalorder %s22, 0
      %p168 = por %p166, %p167
      %p169 = scmp.ne.s32.totalorder %s161, %s163
      %p170 = scmp.eq.s32.totalorder %s27, 1
      %p171 = por %p169, %p170
      %p172 = scmp.ne.s32.totalorder %s163, %s164
      %p173 = scmp.eq.s32.totalorder %s27, 0
      %p174 = por %p172, %p173
      %p175 = scmp.ne.s32.totalorder %s163, %s164
      %p176 = scmp.eq.s32.totalorder %s28, 1
      %p177 = por %p175, %p176
      %p179 = scmp.ne.s32.totalorder %s164, %s178
      %p180 = scmp.eq.s32.totalorder %s28, 0
      %p181 = por %p179, %p180
      %s183 = sadd.s32 %s182, 1
      %p186 = scmp.eq.s32.totalorder %s22, 1
      %p187 = scmp.ne.s32.totalorder %s182, %s184
      %p188 = scmp.eq.s32.totalorder %s22, 0
      %p189 = por %p187, %p188
      %p190 = scmp.ne.s32.totalorder %s182, %s184
      %p191 = scmp.eq.s32.totalorder %s27, 1
      %p192 = por %p190, %p191
      %p193 = scmp.ne.s32.totalorder %s184, %s185
      %p194 = scmp.eq.s32.totalorder %s27, 0
      %p195 = por %p193, %p194
      %p196 = scmp.ne.s32.totalorder %s184, %s185
      %p197 = scmp.eq.s32.totalorder %s28, 1
      %p198 = por %p196, %p197
      %p200 = scmp.ne.s32.totalorder %s185, %s199
      %p201 = scmp.eq.s32.totalorder %s28, 0
      %p202 = por %p200, %p201
      %s203 = ssub.s32 %s22, %s29
      %p204 = scmp.eq.s32.totalorder %s203, 0
      %s206 = sadd.s32 %s205, 1
      %s207 = scalar_select %p204, %s205, %s206
      %p210 = pneg %p204
      %p211 = scmp.eq.s32.totalorder %s22, 1
      %p212 = por %p210, %p211
      %p213 = scmp.ne.s32.totalorder %s205, %s208
      %p214 = scmp.eq.s32.totalorder %s22, 0
      %p215 = por %p213, %p214
      %p216 = scmp.ne.s32.totalorder %s205, %s208
      %p217 = scmp.eq.s32.totalorder %s27, 1
      %p218 = por %p216, %p217
      %p219 = scmp.ne.s32.totalorder %s208, %s209
      %p220 = scmp.eq.s32.totalorder %s27, 0
      %p221 = por %p219, %p220
      %p222 = scmp.ne.s32.totalorder %s208, %s209
      %p223 = scmp.eq.s32.totalorder %s28, 1
      %p224 = por %p222, %p223
      %p226 = scmp.ne.s32.totalorder %s209, %s225
      %p227 = scmp.eq.s32.totalorder %s28, 0
      %p228 = por %p226, %p227
      %p229 = scmp.le.s32.totalorder 1, %s22
      %p230 = scmp.lt.s32.totalorder %s22, 3
      %p231 = pnand %p229, %p230
      %p232 = pneg %p231
      // Predicated region
      $region9: #{tpu_custom_call.1} parent=5 // pred_check
        _
      $region10: #{tpu_custom_call.1} parent=5 // pred_check_branch
        %234 = sbr.rel (%p231) target = $region12
      $region11: #{tpu_custom_call.1} parent=5 // pred_region
        %s235 = ssub.s32 %s22, 1
        // Predicated region
        $region13: #{tpu_custom_call.1} parent=11 // pred_check
          %p236 = pneg %p69
        $region14: #{tpu_custom_call.1} parent=11 // pred_check_branch
          %238 = sbr.rel (%p236) target = $region16
        $region15: #{tpu_custom_call.1} parent=11 // pred_region
          %240 = vsyncadd [#allocation6], 0
          %s242 = sshll.u32 %s1, 4
          %s243 = int_to_ptr.hbm [resolvable:$true] %s242
          %s244 = sshll.u32 [#allocation5], 4
          %s245 = int_to_ptr.vmem [resolvable:$true] %s244
          %247 = dma.hbm_to_vmem [thread:$0]  %s243, 16, %s245, [#allocation6]
        $region16: #{tpu_custom_call.1} parent=11 // pred_fallthru
          _
        // Predicated region
        $region17: #{tpu_custom_call.1} parent=11 // pred_check
          %p248 = pneg %p90
        $region18: #{tpu_custom_call.1} parent=11 // pred_check_branch
          %250 = sbr.rel (%p248) target = $region20
        $region19: #{tpu_custom_call.1} parent=11 // pred_region
          _
        $region20: #{tpu_custom_call.1} parent=11 // pred_fallthru
          _
        // Predicated region
        $region21: #{tpu_custom_call.1} parent=11 // pred_check
          %p251 = pneg %p111
        $region22: #{tpu_custom_call.1} parent=11 // pred_check_branch
          %253 = sbr.rel (%p251) target = $region24
        $region23: #{tpu_custom_call.1} parent=11 // pred_region
          %255 = vsyncadd [#allocation6], 0
          %s256 = sshll.u32 %s3, 4
          %s257 = int_to_ptr.hbm [resolvable:$true] %s256
          %s258 = sshll.u32 [#allocation7], 4
          %s259 = int_to_ptr.vmem [resolvable:$true] %s258
          %264 = dma.hbm_to_vmem [thread:$0]  %s257, 256, %s259, [#allocation6], 64, 64, 4
        $region24: #{tpu_custom_call.1} parent=11 // pred_fallthru
          _
        // Predicated region
        $region25: #{tpu_custom_call.1} parent=11 // pred_check
          %p265 = pneg %p132
        $region26: #{tpu_custom_call.1} parent=11 // pred_check_branch
          %267 = sbr.rel (%p265) target = $region28
        $region27: #{tpu_custom_call.1} parent=11 // pred_region
          _
        $region28: #{tpu_custom_call.1} parent=11 // pred_fallthru
          _
        // Predicated region
        $region29: #{tpu_custom_call.1} parent=11 // pred_check
          %p268 = pneg %p153
        $region30: #{tpu_custom_call.1} parent=11 // pred_check_branch
          %270 = sbr.rel (%p268) target = $region32
        $region31: #{tpu_custom_call.1} parent=11 // pred_region
          %272 = vsyncadd [#allocation9], 0
          %s273 = sshll.u32 %s5, 4
          %s274 = int_to_ptr.hbm [resolvable:$true] %s273
          %s275 = sshll.u32 [#allocation8], 4
          %s276 = int_to_ptr.vmem [resolvable:$true] %s275
          %281 = dma.hbm_to_vmem [thread:$0]  %s274, 256, %s276, [#allocation9], 64, 64, 4
        $region32: #{tpu_custom_call.1} parent=11 // pred_fallthru
          _
        // Predicated region
        $region33: #{tpu_custom_call.1} parent=11 // pred_check
          %p282 = pneg %p174
        $region34: #{tpu_custom_call.1} parent=11 // pred_check_branch
          %284 = sbr.rel (%p282) target = $region36
        $region35: #{tpu_custom_call.1} parent=11 // pred_region
          _
        $region36: #{tpu_custom_call.1} parent=11 // pred_fallthru
          _
        // Predicated region
        $region37: #{tpu_custom_call.1} parent=11 // pred_check
          %p285 = pneg %p195
        $region38: #{tpu_custom_call.1} parent=11 // pred_check_branch
          %287 = sbr.rel (%p285) target = $region40
        $region39: #{tpu_custom_call.1} parent=11 // pred_region
          %289 = vsyncadd [#allocation9], 0
          %s290 = sshll.u32 %s7, 4
          %s291 = int_to_ptr.hbm [resolvable:$true] %s290
          %s292 = sshll.u32 [#allocation10], 4
          %s293 = int_to_ptr.vmem [resolvable:$true] %s292
          %298 = dma.hbm_to_vmem [thread:$0]  %s291, 1024, %s293, [#allocation9], 128, 128, 8
        $region40: #{tpu_custom_call.1} parent=11 // pred_fallthru
          _
      $region12: #{tpu_custom_call.1} parent=5 // pred_fallthru
        _
      %p299 = scmp.lt.s32.totalorder %s22, 2
      // Predicated region
      $region41: #{tpu_custom_call.1} parent=5 // pred_check
        %p300 = pneg %p299
      $region42: #{tpu_custom_call.1} parent=5 // pred_check_branch
        %302 = sbr.rel (%p300) target = $region44
      $region43: #{tpu_custom_call.1} parent=5 // pred_region
        // Predicated region
        $region45: #{tpu_custom_call.1} parent=43 // pred_check
          %p303 = pneg %p42
        $region46: #{tpu_custom_call.1} parent=43 // pred_check_branch
          %305 = sbr.rel (%p303) target = $region48
        $region47: #{tpu_custom_call.1} parent=43 // pred_region
          %s306 = sand.u32 %s32, 1
          %s307 = scalar_lea.sflag [#allocation3], %s306
          %s308 = sand.u32 %s32, 1
          %s309 = smul.addr %s308, 64
          %s310 = scalar_lea.vmem [#allocation2], %s309
          %s311 = smul.u32 4, %s22
          %313 = vsyncadd %s307, 0
          %s314 = smul.addr %s311, 2
          %s315 = smul.addr %s314, 8
          %s316 = scalar_lea.hbm %s0, %s315
          %s317 = sshll.u32 %s316, 4
          %s318 = int_to_ptr.hbm [resolvable:$true] %s317
          %s319 = sshll.u32 %s310, 4
          %s320 = int_to_ptr.vmem [resolvable:$true] %s319
          %325 = dma.hbm_to_vmem [thread:$0]  %s318, 1024, %s320, %s307, 128, 128, 8
        $region48: #{tpu_custom_call.1} parent=43 // pred_fallthru
          _
      $region44: #{tpu_custom_call.1} parent=5 // pred_fallthru
        _
      %p326 = scmp.le.s32.totalorder 1, %s22
      %p327 = scmp.lt.s32.totalorder %s22, 3
      %p328 = pnand %p326, %p327
      %p329 = pneg %p328
      // Predicated region
      $region49: #{tpu_custom_call.1} parent=5 // pred_check
        _
      $region50: #{tpu_custom_call.1} parent=5 // pred_check_branch
        %331 = sbr.rel (%p328) target = $region52
      $region51: #{tpu_custom_call.1} parent=5 // pred_region
        %s332 = ssub.s32 %s22, 1
        %s333 = sand.u32 %s35, 1
        %s334 = scalar_lea.sflag [#allocation3], %s333
        %s335 = sand.u32 %s35, 1
        %s336 = smul.addr %s335, 64
        %s337 = scalar_lea.vmem [#allocation2], %s336
        // Predicated region
        $region53: #{tpu_custom_call.1} parent=51 // pred_check
          %p338 = pneg %p48
        $region54: #{tpu_custom_call.1} parent=51 // pred_check_branch
          %340 = sbr.rel (%p338) target = $region56
        $region55: #{tpu_custom_call.1} parent=51 // pred_region
          %342 = dma.done %s334, 1024
        $region56: #{tpu_custom_call.1} parent=51 // pred_fallthru
          _
        // Predicated region
        $region57: #{tpu_custom_call.1} parent=51 // pred_check
          %p343 = pneg %p69
        $region58: #{tpu_custom_call.1} parent=51 // pred_check_branch
          %345 = sbr.rel (%p343) target = $region60
        $region59: #{tpu_custom_call.1} parent=51 // pred_region
          %347 = dma.done [#allocation6], 16
        $region60: #{tpu_custom_call.1} parent=51 // pred_fallthru
          _
        // Predicated region
        $region61: #{tpu_custom_call.1} parent=51 // pred_check
          %p348 = pneg %p111
        $region62: #{tpu_custom_call.1} parent=51 // pred_check_branch
          %350 = sbr.rel (%p348) target = $region64
        $region63: #{tpu_custom_call.1} parent=51 // pred_region
          %352 = dma.done [#allocation6], 256
        $region64: #{tpu_custom_call.1} parent=51 // pred_fallthru
          _
        // Predicated region
        $region65: #{tpu_custom_call.1} parent=51 // pred_check
          %p353 = pneg %p153
        $region66: #{tpu_custom_call.1} parent=51 // pred_check_branch
          %355 = sbr.rel (%p353) target = $region68
        $region67: #{tpu_custom_call.1} parent=51 // pred_region
          %357 = dma.done [#allocation9], 256
        $region68: #{tpu_custom_call.1} parent=51 // pred_fallthru
          _
        // Predicated region
        $region69: #{tpu_custom_call.1} parent=51 // pred_check
          %p358 = pneg %p195
        $region70: #{tpu_custom_call.1} parent=51 // pred_check_branch
          %360 = sbr.rel (%p358) target = $region72
        $region71: #{tpu_custom_call.1} parent=51 // pred_region
          %362 = dma.done [#allocation9], 1024
        $region72: #{tpu_custom_call.1} parent=51 // pred_fallthru
          _
        %s363 = sand.u32 %s35, 1
        %s364 = scalar_lea.sflag [#allocation3], %s363
        %s365 = sand.u32 %s35, 1
        %s366 = smul.addr %s365, 64
        %s367 = scalar_lea.vmem [#allocation2], %s366
        %p368 = pneg %p48
        %p369 = pneg %p45
        %p370 = pneg %p69
        %p371 = pneg %p66
        %p372 = pneg %p90
        %p373 = pneg %p87
        %p374 = pneg %p111
        %p375 = pneg %p108
        %p376 = pneg %p132
        %p377 = pneg %p129
        %p378 = pneg %p153
        %p379 = pneg %p150
        %p380 = pneg %p174
        %p381 = pneg %p171
        %p382 = pneg %p195
        %p383 = pneg %p192
        %p384 = pneg %p221
        %p385 = pneg %p218
        %s386 = sand.u32 %s208, 1
        %s387 = scalar_lea.sflag [#allocation4], %s386
        %s388 = sand.u32 %s208, 1
        %s389 = smul.addr %s388, 64
        %s390 = scalar_lea.vmem [#allocation11], %s389
        %s391 = smul.u32 4, %s27
        %s392 = smul.u32 4, %s27
        %v394 = vld [vmem:[%s337] sm:$0xff]
        %v395 = vld [vmem:[%s337 + $0x8] sm:$0xff]
        %v396 = vld [vmem:[%s337 + $0x10] sm:$0xff]
        %v397 = vld [vmem:[%s337 + $0x18] sm:$0xff]
        %v398 = vld [vmem:[%s337 + $0x20] sm:$0xff]
        %v399 = vld [vmem:[%s337 + $0x28] sm:$0xff]
        %v400 = vld [vmem:[%s337 + $0x30] sm:$0xff]
        %v401 = vld [vmem:[%s337 + $0x38] sm:$0xff]
        %vm402 = vcmask 261120
        %v403 = vsel %vm402, %v394, 0.0
        %404 = vadd.xlane.f32.xlu0 %v403
        %v405 = vpop.xlane.xlu0 %404
        %v406 = vsel %vm402, %v395, 0.0
        %407 = vadd.xlane.f32.xlu0 %v406
        %v408 = vpop.xlane.xlu0 %407
        %v409 = vsel %vm402, %v396, 0.0
        %410 = vadd.xlane.f32.xlu0 %v409
        %v411 = vpop.xlane.xlu0 %410
        %v412 = vsel %vm402, %v397, 0.0
        %413 = vadd.xlane.f32.xlu0 %v412
        %v414 = vpop.xlane.xlu0 %413
        %v415 = vsel %vm402, %v398, 0.0
        %416 = vadd.xlane.f32.xlu0 %v415
        %v417 = vpop.xlane.xlu0 %416
        %v418 = vsel %vm402, %v399, 0.0
        %419 = vadd.xlane.f32.xlu0 %v418
        %v420 = vpop.xlane.xlu0 %419
        %v421 = vsel %vm402, %v400, 0.0
        %422 = vadd.xlane.f32.xlu0 %v421
        %v423 = vpop.xlane.xlu0 %422
        %v424 = vsel %vm402, %v401, 0.0
        %425 = vadd.xlane.f32.xlu0 %v424
        %v426 = vpop.xlane.xlu0 %425
        %v427 = vrcp.pop 32.0
        %v428 = vmul.f32 32.0, %v427
        %v429 = vsub.f32 1.0, %v428
        %v430 = vmul.f32 %v427, %v429
        %v431 = vadd.f32 %v427, %v430
        %vm432 = vweird.f32 %v427
        %v433 = vsel %vm432, %v427, %v431
        %v434 = vmul.f32 %v405, %v433
        %v435 = vmul.f32 %v408, %v433
        %v436 = vmul.f32 %v411, %v433
        %v437 = vmul.f32 %v414, %v433
        %v438 = vmul.f32 %v417, %v433
        %v439 = vmul.f32 %v420, %v433
        %v440 = vmul.f32 %v423, %v433
        %v441 = vmul.f32 %v426, %v433
        %v442 = vsub.f32 %v394, %v434
        %v443 = vsub.f32 %v395, %v435
        %v444 = vsub.f32 %v396, %v436
        %v445 = vsub.f32 %v397, %v437
        %v446 = vsub.f32 %v398, %v438
        %v447 = vsub.f32 %v399, %v439
        %v448 = vsub.f32 %v400, %v440
        %v449 = vsub.f32 %v401, %v441
        %v450 = vmul.f32 %v442, %v442
        %v451 = vmul.f32 %v443, %v443
        %v452 = vmul.f32 %v444, %v444
        %v453 = vmul.f32 %v445, %v445
        %v454 = vmul.f32 %v446, %v446
        %v455 = vmul.f32 %v447, %v447
        %v456 = vmul.f32 %v448, %v448
        %v457 = vmul.f32 %v449, %v449
        %v458 = vsel %vm402, %v450, 0.0
        %459 = vadd.xlane.f32.xlu0 %v458
        %v460 = vpop.xlane.xlu0 %459
        %v461 = vsel %vm402, %v451, 0.0
        %462 = vadd.xlane.f32.xlu0 %v461
        %v463 = vpop.xlane.xlu0 %462
        %v464 = vsel %vm402, %v452, 0.0
        %465 = vadd.xlane.f32.xlu0 %v464
        %v466 = vpop.xlane.xlu0 %465
        %v467 = vsel %vm402, %v453, 0.0
        %468 = vadd.xlane.f32.xlu0 %v467
        %v469 = vpop.xlane.xlu0 %468
        %v470 = vsel %vm402, %v454, 0.0
        %471 = vadd.xlane.f32.xlu0 %v470
        %v472 = vpop.xlane.xlu0 %471
        %v473 = vsel %vm402, %v455, 0.0
        %474 = vadd.xlane.f32.xlu0 %v473
        %v475 = vpop.xlane.xlu0 %474
        %v476 = vsel %vm402, %v456, 0.0
        %477 = vadd.xlane.f32.xlu0 %v476
        %v478 = vpop.xlane.xlu0 %477
        %v479 = vsel %vm402, %v457, 0.0
        %480 = vadd.xlane.f32.xlu0 %v479
        %v481 = vpop.xlane.xlu0 %480
        %v482 = vmul.f32 %v460, %v433
        %v483 = vmul.f32 %v463, %v433
        %v484 = vmul.f32 %v466, %v433
        %v485 = vmul.f32 %v469, %v433
        %v486 = vmul.f32 %v472, %v433
        %v487 = vmul.f32 %v475, %v433
        %v488 = vmul.f32 %v478, %v433
        %v489 = vmul.f32 %v481, %v433
        %v490 = vadd.f32 %v482, 1e-05
        %v491 = vadd.f32 %v483, 1e-05
        %v492 = vadd.f32 %v484, 1e-05
        %v493 = vadd.f32 %v485, 1e-05
        %v494 = vadd.f32 %v486, 1e-05
        %v495 = vadd.f32 %v487, 1e-05
        %v496 = vadd.f32 %v488, 1e-05
        %v497 = vadd.f32 %v489, 1e-05
        %v498 = vrsqrt.pop %v490
        %v499 = vmul.f32 %v498, %v490
        %v500 = vmul.f32 %v499, %v498
        %v501 = vmul.f32 0.5, %v500
        %v502 = vsub.f32 1.5, %v501
        %v503 = vmul.f32 %v498, %v502
        %vm504 = vweird.f32 %v490
        %vm505 = vweird.f32 %v498
        %vm506 = vmor %vm504, %vm505
        %v507 = vsel %vm506, %v498, %v503
        %v508 = vrsqrt.pop %v491
        %v509 = vmul.f32 %v508, %v491
        %v510 = vmul.f32 %v509, %v508
        %v511 = vmul.f32 0.5, %v510
        %v512 = vsub.f32 1.5, %v511
        %v513 = vmul.f32 %v508, %v512
        %vm514 = vweird.f32 %v491
        %vm515 = vweird.f32 %v508
        %vm516 = vmor %vm514, %vm515
        %v517 = vsel %vm516, %v508, %v513
        %v518 = vrsqrt.pop %v492
        %v519 = vmul.f32 %v518, %v492
        %v520 = vmul.f32 %v519, %v518
        %v521 = vmul.f32 0.5, %v520
        %v522 = vsub.f32 1.5, %v521
        %v523 = vmul.f32 %v518, %v522
        %vm524 = vweird.f32 %v492
        %vm525 = vweird.f32 %v518
        %vm526 = vmor %vm524, %vm525
        %v527 = vsel %vm526, %v518, %v523
        %v528 = vrsqrt.pop %v493
        %v529 = vmul.f32 %v528, %v493
        %v530 = vmul.f32 %v529, %v528
        %v531 = vmul.f32 0.5, %v530
        %v532 = vsub.f32 1.5, %v531
        %v533 = vmul.f32 %v528, %v532
        %vm534 = vweird.f32 %v493
        %vm535 = vweird.f32 %v528
        %vm536 = vmor %vm534, %vm535
        %v537 = vsel %vm536, %v528, %v533
        %v538 = vrsqrt.pop %v494
        %v539 = vmul.f32 %v538, %v494
        %v540 = vmul.f32 %v539, %v538
        %v541 = vmul.f32 0.5, %v540
        %v542 = vsub.f32 1.5, %v541
        %v543 = vmul.f32 %v538, %v542
        %vm544 = vweird.f32 %v494
        %vm545 = vweird.f32 %v538
        %vm546 = vmor %vm544, %vm545
        %v547 = vsel %vm546, %v538, %v543
        %v548 = vrsqrt.pop %v495
        %v549 = vmul.f32 %v548, %v495
        %v550 = vmul.f32 %v549, %v548
        %v551 = vmul.f32 0.5, %v550
        %v552 = vsub.f32 1.5, %v551
        %v553 = vmul.f32 %v548, %v552
        %vm554 = vweird.f32 %v495
        %vm555 = vweird.f32 %v548
        %vm556 = vmor %vm554, %vm555
        %v557 = vsel %vm556, %v548, %v553
        %v558 = vrsqrt.pop %v496
        %v559 = vmul.f32 %v558, %v496
        %v560 = vmul.f32 %v559, %v558
        %v561 = vmul.f32 0.5, %v560
        %v562 = vsub.f32 1.5, %v561
        %v563 = vmul.f32 %v558, %v562
        %vm564 = vweird.f32 %v496
        %vm565 = vweird.f32 %v558
        %vm566 = vmor %vm564, %vm565
        %v567 = vsel %vm566, %v558, %v563
        %v568 = vrsqrt.pop %v497
        %v569 = vmul.f32 %v568, %v497
        %v570 = vmul.f32 %v569, %v568
        %v571 = vmul.f32 0.5, %v570
        %v572 = vsub.f32 1.5, %v571
        %v573 = vmul.f32 %v568, %v572
        %vm574 = vweird.f32 %v497
        %vm575 = vweird.f32 %v568
        %vm576 = vmor %vm574, %vm575
        %v577 = vsel %vm576, %v568, %v573
        %v578 = vmul.f32 %v442, %v507
        %v579 = vmul.f32 %v443, %v517
        %v580 = vmul.f32 %v444, %v527
        %v581 = vmul.f32 %v445, %v537
        %v582 = vmul.f32 %v446, %v547
        %v583 = vmul.f32 %v447, %v557
        %v584 = vmul.f32 %v448, %v567
        %v585 = vmul.f32 %v449, %v577
        %v586 = vld [vmem:[#allocation5] sm:$0x1]
        %v588 = vperm.slane %v586, 0
        %v590 = vmul.f32 %v578, %v588
        %v591 = vmul.f32 %v579, %v588
        %v592 = vmul.f32 %v580, %v588
        %v593 = vmul.f32 %v581, %v588
        %v594 = vmul.f32 %v582, %v588
        %v595 = vmul.f32 %v583, %v588
        %v596 = vmul.f32 %v584, %v588
        %v597 = vmul.f32 %v585, %v588
        %v598 = vld [vmem:[%s2] sm:$0x1]
        %v600 = vperm.slane %v598, 0
        %v602 = vadd.f32 %v590, %v600
        %v603 = vadd.f32 %v591, %v600
        %v604 = vadd.f32 %v592, %v600
        %v605 = vadd.f32 %v593, %v600
        %v606 = vadd.f32 %v594, %v600
        %v607 = vadd.f32 %v595, %v600
        %v608 = vadd.f32 %v596, %v600
        %v609 = vadd.f32 %v597, %v600
        %v610 = vpack.c.bf16 %v603, %v602
        %v611 = vpack.c.bf16 %v605, %v604
        %v612 = vpack.c.bf16 %v607, %v606
        %v613 = vpack.c.bf16 %v609, %v608
        %v614 = vld [vmem:[#allocation7] sm:$0xf]
        %v615 = vld [vmem:[#allocation7 + $0x4] sm:$0xf]
        %v616 = vld [vmem:[#allocation7 + $0x8] sm:$0xf]
        %v617 = vld [vmem:[#allocation7 + $0xc] sm:$0xf]
        %v618 = vld [vmem:[%s4] sm:$0x1]
        %v620 = vperm.slane %v618, 0
        %v626 = vunpack.c.l.b16 %v614
        %v627 = vunpack.c.l.b16 %v615
        %v628 = vunpack.c.l.b16 %v616
        %v629 = vunpack.c.l.b16 %v617
        %v630 = vpack.c.b16 %v627, %v626
        %v631 = vpack.c.b16 %v629, %v628
        %v635 = vsel %vm402, %v610, 0
        %v638 = vsel %vm402, %v611, 0
        %v641 = vsel %vm402, %v612, 0
        %v644 = vsel %vm402, %v613, 0
        %646 = vmatpush.bf16.msra.mxu0 0
        %647 = vmatpush.bf16.msra.mxu0 0
        %648 = vmatpush.bf16.msra.mxu0 0
        %649 = vmatpush.bf16.msra.mxu0 0
        %650 = vmatpush.bf16.msra.mxu0 0
        %651 = vmatpush.bf16.msra.mxu0 0
        %652 = vmatpush.bf16.msra.mxu0 %v631
        %653 = vmatpush.bf16.msra.mxu0 %v630
        %654 = vmatmul.bf16.gmra.mxu0 %v635
        %v655 = vpop.f32.mrf.mxu0
        %v656 = vadd.f32 %v620, %v655
        %v657 = vpop.f32.mrf.mxu0
        %v658 = vadd.f32 %v620, %v657
        %659 = vmatmul.bf16.gmra.mxu0 %v638
        %v660 = vpop.f32.mrf.mxu0
        %v661 = vadd.f32 %v620, %v660
        %v662 = vpop.f32.mrf.mxu0
        %v663 = vadd.f32 %v620, %v662
        %664 = vmatmul.bf16.gmra.mxu0 %v641
        %v665 = vpop.f32.mrf.mxu0
        %v666 = vadd.f32 %v620, %v665
        %v667 = vpop.f32.mrf.mxu0
        %v668 = vadd.f32 %v620, %v667
        %669 = vmatmul.bf16.gmra.mxu0 %v644
        %v670 = vpop.f32.mrf.mxu0
        %v671 = vadd.f32 %v620, %v670
        %v672 = vpop.f32.mrf.mxu0
        %v673 = vadd.f32 %v620, %v672
        %674 = vdwg.mxu0
        %v675 = vmul.f32 %v656, 0.35355338
        %v676 = vmul.f32 %v658, 0.35355338
        %v677 = vmul.f32 %v661, 0.35355338
        %v678 = vmul.f32 %v663, 0.35355338
        %v679 = vmul.f32 %v666, 0.35355338
        %v680 = vmul.f32 %v668, 0.35355338
        %v681 = vmul.f32 %v671, 0.35355338
        %v682 = vmul.f32 %v673, 0.35355338
        %v683 = vpack.c.bf16 %v675, %v675
        %v684 = vpack.c.bf16 %v676, %v676
        %v685 = vpack.c.bf16 %v677, %v677
        %v686 = vpack.c.bf16 %v678, %v678
        %v687 = vpack.c.bf16 %v679, %v679
        %v688 = vpack.c.bf16 %v680, %v680
        %v689 = vpack.c.bf16 %v681, %v681
        %v690 = vpack.c.bf16 %v682, %v682
        %v691 = vpack.c.bf16 %v656, %v656
        %v692 = vpack.c.bf16 %v658, %v658
        %v693 = vpack.c.bf16 %v661, %v661
        %v694 = vpack.c.bf16 %v663, %v663
        %v695 = vpack.c.bf16 %v666, %v666
        %v696 = vpack.c.bf16 %v668, %v668
        %v697 = vpack.c.bf16 %v671, %v671
        %v698 = vpack.c.bf16 %v673, %v673
        %v699 = vld [vmem:[#allocation10] sm:$0xff]
        %v700 = vld [vmem:[#allocation10 + $0x8] sm:$0xff]
        %v703 = vunpack.c.l.b16 %v683
        %v704 = vunpack.c.l.b16 %v684
        %v705 = vpack.c.b16 %v704, %v703
        %v708 = vunpack.c.l.b16 %v691
        %v709 = vunpack.c.l.b16 %v692
        %v710 = vpack.c.b16 %v709, %v708
        %711 = vrot.lane.b32.xlu0 %v710, 96
        %v712 = vpop.permute.xlu0 %711
        %vm713 = vcmask 64512
        %v715 = vsel %vm713, %v705, 0
        %v718 = vsel %vm713, %v712, 0
        %720 = vmatpush.bf16.xpose.msra.mxu0 0
        %721 = vmatpush.bf16.xpose.msra.mxu0 0
        %722 = vmatpush.bf16.xpose.msra.mxu0 0
        %723 = vmatpush.bf16.xpose.msra.mxu0 0
        %724 = vmatpush.bf16.xpose.msra.mxu0 0
        %725 = vmatpush.bf16.xpose.msra.mxu0 0
        %726 = vmatpush.bf16.xpose.msra.mxu0 0
        %727 = vmatpush.bf16.xpose.msra.mxu0 %v718
        %728 = vmatmul.bf16.gmra.mxu0 %v715
        %v729 = vpop.f32.mrf.mxu0
        %v730 = vadd.f32 %v699, %v729
        %v731 = vpop.f32.mrf.mxu0
        %v732 = vadd.f32 %v700, %v731
        %733 = vdwg.mxu0
        %v736 = vunpack.c.l.b16 %v685
        %v737 = vunpack.c.l.b16 %v686
        %v738 = vpack.c.b16 %v737, %v736
        %v741 = vunpack.c.l.b16 %v693
        %v742 = vunpack.c.l.b16 %v694
        %v743 = vpack.c.b16 %v742, %v741
        %744 = vrot.lane.b32.xlu0 %v743, 96
        %v745 = vpop.permute.xlu0 %744
        %v747 = vsel %vm713, %v738, 0
        %v750 = vsel %vm713, %v745, 0
        %752 = vmatpush.bf16.xpose.msra.mxu0 0
        %753 = vmatpush.bf16.xpose.msra.mxu0 0
        %754 = vmatpush.bf16.xpose.msra.mxu0 0
        %755 = vmatpush.bf16.xpose.msra.mxu0 0
        %756 = vmatpush.bf16.xpose.msra.mxu0 0
        %757 = vmatpush.bf16.xpose.msra.mxu0 0
        %758 = vmatpush.bf16.xpose.msra.mxu0 0
        %759 = vmatpush.bf16.xpose.msra.mxu0 %v750
        %760 = vmatmul.bf16.gmra.mxu0 %v747
        %v761 = vpop.f32.mrf.mxu0
        %v762 = vadd.f32 %v699, %v761
        %v763 = vpop.f32.mrf.mxu0
        %v764 = vadd.f32 %v700, %v763
        %765 = vdwg.mxu0
        %v768 = vunpack.c.l.b16 %v687
        %v769 = vunpack.c.l.b16 %v688
        %v770 = vpack.c.b16 %v769, %v768
        %v773 = vunpack.c.l.b16 %v695
        %v774 = vunpack.c.l.b16 %v696
        %v775 = vpack.c.b16 %v774, %v773
        %776 = vrot.lane.b32.xlu0 %v775, 96
        %v777 = vpop.permute.xlu0 %776
        %v779 = vsel %vm713, %v770, 0
        %v782 = vsel %vm713, %v777, 0
        %784 = vmatpush.bf16.xpose.msra.mxu0 0
        %785 = vmatpush.bf16.xpose.msra.mxu0 0
        %786 = vmatpush.bf16.xpose.msra.mxu0 0
        %787 = vmatpush.bf16.xpose.msra.mxu0 0
        %788 = vmatpush.bf16.xpose.msra.mxu0 0
        %789 = vmatpush.bf16.xpose.msra.mxu0 0
        %790 = vmatpush.bf16.xpose.msra.mxu0 0
        %791 = vmatpush.bf16.xpose.msra.mxu0 %v782
        %792 = vmatmul.bf16.gmra.mxu0 %v779
        %v793 = vpop.f32.mrf.mxu0
        %v794 = vadd.f32 %v699, %v793
        %v795 = vpop.f32.mrf.mxu0
        %v796 = vadd.f32 %v700, %v795
        %797 = vdwg.mxu0
        %v800 = vunpack.c.l.b16 %v689
        %v801 = vunpack.c.l.b16 %v690
        %v802 = vpack.c.b16 %v801, %v800
        %v805 = vunpack.c.l.b16 %v697
        %v806 = vunpack.c.l.b16 %v698
        %v807 = vpack.c.b16 %v806, %v805
        %808 = vrot.lane.b32.xlu0 %v807, 96
        %v809 = vpop.permute.xlu0 %808
        %v811 = vsel %vm713, %v802, 0
        %v814 = vsel %vm713, %v809, 0
        %816 = vmatpush.bf16.xpose.msra.mxu0 0
        %817 = vmatpush.bf16.xpose.msra.mxu0 0
        %818 = vmatpush.bf16.xpose.msra.mxu0 0
        %819 = vmatpush.bf16.xpose.msra.mxu0 0
        %820 = vmatpush.bf16.xpose.msra.mxu0 0
        %821 = vmatpush.bf16.xpose.msra.mxu0 0
        %822 = vmatpush.bf16.xpose.msra.mxu0 0
        %823 = vmatpush.bf16.xpose.msra.mxu0 %v814
        %824 = vmatmul.bf16.gmra.mxu0 %v811
        %v825 = vpop.f32.mrf.mxu0
        %v826 = vadd.f32 %v699, %v825
        %v827 = vpop.f32.mrf.mxu0
        %v828 = vadd.f32 %v700, %v827
        %829 = vdwg.mxu0
        %vm830 = vcmask 130048
        %v831 = vsel %vm830, %v730, -inf
        %832 = vmax.xlane.f32.xlu0 %v831
        %v833 = vpop.xlane.xlu0 %832
        %v834 = vsel %vm830, %v732, -inf
        %835 = vmax.xlane.f32.xlu0 %v834
        %v836 = vpop.xlane.xlu0 %835
        %v837 = vsel %vm830, %v762, -inf
        %838 = vmax.xlane.f32.xlu0 %v837
        %v839 = vpop.xlane.xlu0 %838
        %v840 = vsel %vm830, %v764, -inf
        %841 = vmax.xlane.f32.xlu0 %v840
        %v842 = vpop.xlane.xlu0 %841
        %v843 = vsel %vm830, %v794, -inf
        %844 = vmax.xlane.f32.xlu0 %v843
        %v845 = vpop.xlane.xlu0 %844
        %v846 = vsel %vm830, %v796, -inf
        %847 = vmax.xlane.f32.xlu0 %v846
        %v848 = vpop.xlane.xlu0 %847
        %v849 = vsel %vm830, %v826, -inf
        %850 = vmax.xlane.f32.xlu0 %v849
        %v851 = vpop.xlane.xlu0 %850
        %v852 = vsel %vm830, %v828, -inf
        %853 = vmax.xlane.f32.xlu0 %v852
        %v854 = vpop.xlane.xlu0 %853
        %v855 = vsub.f32 %v730, %v833
        %v856 = vsub.f32 %v732, %v836
        %v857 = vsub.f32 %v762, %v839
        %v858 = vsub.f32 %v764, %v842
        %v859 = vsub.f32 %v794, %v845
        %v860 = vsub.f32 %v796, %v848
        %v861 = vsub.f32 %v826, %v851
        %v862 = vsub.f32 %v828, %v854
        %v863 = vmul.f32 %v855, 1.442695
        %v864 = vpow.pop %v863
        %v865 = vmul.f32 %v856, 1.442695
        %v866 = vpow.pop %v865
        %v867 = vmul.f32 %v857, 1.442695
        %v868 = vpow.pop %v867
        %v869 = vmul.f32 %v858, 1.442695
        %v870 = vpow.pop %v869
        %v871 = vmul.f32 %v859, 1.442695
        %v872 = vpow.pop %v871
        %v873 = vmul.f32 %v860, 1.442695
        %v874 = vpow.pop %v873
        %v875 = vmul.f32 %v861, 1.442695
        %v876 = vpow.pop %v875
        %v877 = vmul.f32 %v862, 1.442695
        %v878 = vpow.pop %v877
        %v879 = vsel %vm830, %v864, 0.0
        %880 = vadd.xlane.f32.xlu0 %v879
        %v881 = vpop.xlane.xlu0 %880
        %v882 = vsel %vm830, %v866, 0.0
        %883 = vadd.xlane.f32.xlu0 %v882
        %v884 = vpop.xlane.xlu0 %883
        %v885 = vsel %vm830, %v868, 0.0
        %886 = vadd.xlane.f32.xlu0 %v885
        %v887 = vpop.xlane.xlu0 %886
        %v888 = vsel %vm830, %v870, 0.0
        %889 = vadd.xlane.f32.xlu0 %v888
        %v890 = vpop.xlane.xlu0 %889
        %v891 = vsel %vm830, %v872, 0.0
        %892 = vadd.xlane.f32.xlu0 %v891
        %v893 = vpop.xlane.xlu0 %892
        %v894 = vsel %vm830, %v874, 0.0
        %895 = vadd.xlane.f32.xlu0 %v894
        %v896 = vpop.xlane.xlu0 %895
        %v897 = vsel %vm830, %v876, 0.0
        %898 = vadd.xlane.f32.xlu0 %v897
        %v899 = vpop.xlane.xlu0 %898
        %v900 = vsel %vm830, %v878, 0.0
        %901 = vadd.xlane.f32.xlu0 %v900
        %v902 = vpop.xlane.xlu0 %901
        %v903 = vrcp.pop %v881
        %v904 = vrcp.pop %v884
        %v905 = vrcp.pop %v887
        %v906 = vrcp.pop %v890
        %v907 = vrcp.pop %v893
        %v908 = vrcp.pop %v896
        %v909 = vrcp.pop %v899
        %v910 = vrcp.pop %v902
        %v911 = vmul.f32 %v864, %v903
        %v912 = vmul.f32 %v866, %v904
        %v913 = vmul.f32 %v868, %v905
        %v914 = vmul.f32 %v870, %v906
        %v915 = vmul.f32 %v872, %v907
        %v916 = vmul.f32 %v874, %v908
        %v917 = vmul.f32 %v876, %v909
        %v918 = vmul.f32 %v878, %v910
        %v919 = vpack.c.bf16 %v911, %v911
        %v920 = vpack.c.bf16 %v912, %v912
        %v921 = vpack.c.bf16 %v913, %v913
        %v922 = vpack.c.bf16 %v914, %v914
        %v923 = vpack.c.bf16 %v915, %v915
        %v924 = vpack.c.bf16 %v916, %v916
        %v925 = vpack.c.bf16 %v917, %v917
        %v926 = vpack.c.bf16 %v918, %v918
        %v929 = vunpack.c.l.b16 %v919
        %v930 = vunpack.c.l.b16 %v920
        %v931 = vpack.c.b16 %v930, %v929
        %932 = vrot.lane.b32.xlu0 %v710, 64
        %v933 = vpop.permute.xlu0 %932
        %v936 = vsel %vm830, %v931, 0
        %938 = vmatpush.bf16.msra.mxu0 0
        %939 = vmatpush.bf16.msra.mxu0 0
        %940 = vmatpush.bf16.msra.mxu0 0
        %941 = vmatpush.bf16.msra.mxu0 0
        %942 = vmatpush.bf16.msra.mxu0 0
        %943 = vmatpush.bf16.msra.mxu0 0
        %944 = vmatpush.bf16.msra.mxu0 0
        %945 = vmatpush.bf16.msra.mxu0 %v933
        %946 = vmatmul.bf16.gmra.mxu0 %v936
        %v947 = vpop.f32.mrf.mxu0
        %v948 = vadd.f32 0.0, %v947
        %v949 = vpop.f32.mrf.mxu0
        %v950 = vadd.f32 0.0, %v949
        %951 = vdwg.mxu0
        %v954 = vunpack.c.l.b16 %v921
        %v955 = vunpack.c.l.b16 %v922
        %v956 = vpack.c.b16 %v955, %v954
        %957 = vrot.lane.b32.xlu0 %v743, 64
        %v958 = vpop.permute.xlu0 %957
        %v961 = vsel %vm830, %v956, 0
        %963 = vmatpush.bf16.msra.mxu0 0
        %964 = vmatpush.bf16.msra.mxu0 0
        %965 = vmatpush.bf16.msra.mxu0 0
        %966 = vmatpush.bf16.msra.mxu0 0
        %967 = vmatpush.bf16.msra.mxu0 0
        %968 = vmatpush.bf16.msra.mxu0 0
        %969 = vmatpush.bf16.msra.mxu0 0
        %970 = vmatpush.bf16.msra.mxu0 %v958
        %971 = vmatmul.bf16.gmra.mxu0 %v961
        %v972 = vpop.f32.mrf.mxu0
        %v973 = vadd.f32 0.0, %v972
        %v974 = vpop.f32.mrf.mxu0
        %v975 = vadd.f32 0.0, %v974
        %976 = vdwg.mxu0
        %v979 = vunpack.c.l.b16 %v923
        %v980 = vunpack.c.l.b16 %v924
        %v981 = vpack.c.b16 %v980, %v979
        %982 = vrot.lane.b32.xlu0 %v775, 64
        %v983 = vpop.permute.xlu0 %982
        %v986 = vsel %vm830, %v981, 0
        %988 = vmatpush.bf16.msra.mxu0 0
        %989 = vmatpush.bf16.msra.mxu0 0
        %990 = vmatpush.bf16.msra.mxu0 0
        %991 = vmatpush.bf16.msra.mxu0 0
        %992 = vmatpush.bf16.msra.mxu0 0
        %993 = vmatpush.bf16.msra.mxu0 0
        %994 = vmatpush.bf16.msra.mxu0 0
        %995 = vmatpush.bf16.msra.mxu0 %v983
        %996 = vmatmul.bf16.gmra.mxu0 %v986
        %v997 = vpop.f32.mrf.mxu0
        %v998 = vadd.f32 0.0, %v997
        %v999 = vpop.f32.mrf.mxu0
        %v1000 = vadd.f32 0.0, %v999
        %1001 = vdwg.mxu0
        %v1004 = vunpack.c.l.b16 %v925
        %v1005 = vunpack.c.l.b16 %v926
        %v1006 = vpack.c.b16 %v1005, %v1004
        %1007 = vrot.lane.b32.xlu0 %v807, 64
        %v1008 = vpop.permute.xlu0 %1007
        %v1011 = vsel %vm830, %v1006, 0
        %1013 = vmatpush.bf16.msra.mxu0 0
        %1014 = vmatpush.bf16.msra.mxu0 0
        %1015 = vmatpush.bf16.msra.mxu0 0
        %1016 = vmatpush.bf16.msra.mxu0 0
        %1017 = vmatpush.bf16.msra.mxu0 0
        %1018 = vmatpush.bf16.msra.mxu0 0
        %1019 = vmatpush.bf16.msra.mxu0 0
        %1020 = vmatpush.bf16.msra.mxu0 %v1008
        %1021 = vmatmul.bf16.gmra.mxu0 %v1011
        %v1022 = vpop.f32.mrf.mxu0
        %v1023 = vadd.f32 0.0, %v1022
        %v1024 = vpop.f32.mrf.mxu0
        %v1025 = vadd.f32 0.0, %v1024
        %1026 = vdwg.mxu0
        %s1027 = scalar_lea.vmem [#allocation10], 16
        %v1028 = vld [vmem:[%s1027] sm:$0xff]
        %v1029 = vld [vmem:[%s1027 + $0x8] sm:$0xff]
        %1030 = vrot.lane.b32.xlu0 %v705, 120
        %v1031 = vpop.permute.xlu0 %1030
        %1032 = vrot.lane.b32.xlu0 %v710, 88
        %v1033 = vpop.permute.xlu0 %1032
        %v1035 = vsel %vm713, %v1031, 0
        %v1038 = vsel %vm713, %v1033, 0
        %1040 = vmatpush.bf16.xpose.msra.mxu0 0
        %1041 = vmatpush.bf16.xpose.msra.mxu0 0
        %1042 = vmatpush.bf16.xpose.msra.mxu0 0
        %1043 = vmatpush.bf16.xpose.msra.mxu0 0
        %1044 = vmatpush.bf16.xpose.msra.mxu0 0
        %1045 = vmatpush.bf16.xpose.msra.mxu0 0
        %1046 = vmatpush.bf16.xpose.msra.mxu0 0
        %1047 = vmatpush.bf16.xpose.msra.mxu0 %v1038
        %1048 = vmatmul.bf16.gmra.mxu0 %v1035
        %v1049 = vpop.f32.mrf.mxu0
        %v1050 = vadd.f32 %v1028, %v1049
        %v1051 = vpop.f32.mrf.mxu0
        %v1052 = vadd.f32 %v1029, %v1051
        %1053 = vdwg.mxu0
        %1054 = vrot.lane.b32.xlu0 %v738, 120
        %v1055 = vpop.permute.xlu0 %1054
        %1056 = vrot.lane.b32.xlu0 %v743, 88
        %v1057 = vpop.permute.xlu0 %1056
        %v1059 = vsel %vm713, %v1055, 0
        %v1062 = vsel %vm713, %v1057, 0
        %1064 = vmatpush.bf16.xpose.msra.mxu0 0
        %1065 = vmatpush.bf16.xpose.msra.mxu0 0
        %1066 = vmatpush.bf16.xpose.msra.mxu0 0
        %1067 = vmatpush.bf16.xpose.msra.mxu0 0
        %1068 = vmatpush.bf16.xpose.msra.mxu0 0
        %1069 = vmatpush.bf16.xpose.msra.mxu0 0
        %1070 = vmatpush.bf16.xpose.msra.mxu0 0
        %1071 = vmatpush.bf16.xpose.msra.mxu0 %v1062
        %1072 = vmatmul.bf16.gmra.mxu0 %v1059
        %v1073 = vpop.f32.mrf.mxu0
        %v1074 = vadd.f32 %v1028, %v1073
        %v1075 = vpop.f32.mrf.mxu0
        %v1076 = vadd.f32 %v1029, %v1075
        %1077 = vdwg.mxu0
        %1078 = vrot.lane.b32.xlu0 %v770, 120
        %v1079 = vpop.permute.xlu0 %1078
        %1080 = vrot.lane.b32.xlu0 %v775, 88
        %v1081 = vpop.permute.xlu0 %1080
        %v1083 = vsel %vm713, %v1079, 0
        %v1086 = vsel %vm713, %v1081, 0
        %1088 = vmatpush.bf16.xpose.msra.mxu0 0
        %1089 = vmatpush.bf16.xpose.msra.mxu0 0
        %1090 = vmatpush.bf16.xpose.msra.mxu0 0
        %1091 = vmatpush.bf16.xpose.msra.mxu0 0
        %1092 = vmatpush.bf16.xpose.msra.mxu0 0
        %1093 = vmatpush.bf16.xpose.msra.mxu0 0
        %1094 = vmatpush.bf16.xpose.msra.mxu0 0
        %1095 = vmatpush.bf16.xpose.msra.mxu0 %v1086
        %1096 = vmatmul.bf16.gmra.mxu0 %v1083
        %v1097 = vpop.f32.mrf.mxu0
        %v1098 = vadd.f32 %v1028, %v1097
        %v1099 = vpop.f32.mrf.mxu0
        %v1100 = vadd.f32 %v1029, %v1099
        %1101 = vdwg.mxu0
        %1102 = vrot.lane.b32.xlu0 %v802, 120
        %v1103 = vpop.permute.xlu0 %1102
        %1104 = vrot.lane.b32.xlu0 %v807, 88
        %v1105 = vpop.permute.xlu0 %1104
        %v1107 = vsel %vm713, %v1103, 0
        %v1110 = vsel %vm713, %v1105, 0
        %1112 = vmatpush.bf16.xpose.msra.mxu0 0
        %1113 = vmatpush.bf16.xpose.msra.mxu0 0
        %1114 = vmatpush.bf16.xpose.msra.mxu0 0
        %1115 = vmatpush.bf16.xpose.msra.mxu0 0
        %1116 = vmatpush.bf16.xpose.msra.mxu0 0
        %1117 = vmatpush.bf16.xpose.msra.mxu0 0
        %1118 = vmatpush.bf16.xpose.msra.mxu0 0
        %1119 = vmatpush.bf16.xpose.msra.mxu0 %v1110
        %1120 = vmatmul.bf16.gmra.mxu0 %v1107
        %v1121 = vpop.f32.mrf.mxu0
        %v1122 = vadd.f32 %v1028, %v1121
        %v1123 = vpop.f32.mrf.mxu0
        %v1124 = vadd.f32 %v1029, %v1123
        %1125 = vdwg.mxu0
        %v1126 = vsel %vm830, %v1050, -inf
        %1127 = vmax.xlane.f32.xlu0 %v1126
        %v1128 = vpop.xlane.xlu0 %1127
        %v1129 = vsel %vm830, %v1052, -inf
        %1130 = vmax.xlane.f32.xlu0 %v1129
        %v1131 = vpop.xlane.xlu0 %1130
        %v1132 = vsel %vm830, %v1074, -inf
        %1133 = vmax.xlane.f32.xlu0 %v1132
        %v1134 = vpop.xlane.xlu0 %1133
        %v1135 = vsel %vm830, %v1076, -inf
        %1136 = vmax.xlane.f32.xlu0 %v1135
        %v1137 = vpop.xlane.xlu0 %1136
        %v1138 = vsel %vm830, %v1098, -inf
        %1139 = vmax.xlane.f32.xlu0 %v1138
        %v1140 = vpop.xlane.xlu0 %1139
        %v1141 = vsel %vm830, %v1100, -inf
        %1142 = vmax.xlane.f32.xlu0 %v1141
        %v1143 = vpop.xlane.xlu0 %1142
        %v1144 = vsel %vm830, %v1122, -inf
        %1145 = vmax.xlane.f32.xlu0 %v1144
        %v1146 = vpop.xlane.xlu0 %1145
        %v1147 = vsel %vm830, %v1124, -inf
        %1148 = vmax.xlane.f32.xlu0 %v1147
        %v1149 = vpop.xlane.xlu0 %1148
        %v1150 = vsub.f32 %v1050, %v1128
        %v1151 = vsub.f32 %v1052, %v1131
        %v1152 = vsub.f32 %v1074, %v1134
        %v1153 = vsub.f32 %v1076, %v1137
        %v1154 = vsub.f32 %v1098, %v1140
        %v1155 = vsub.f32 %v1100, %v1143
        %v1156 = vsub.f32 %v1122, %v1146
        %v1157 = vsub.f32 %v1124, %v1149
        %v1158 = vmul.f32 %v1150, 1.442695
        %v1159 = vpow.pop %v1158
        %v1160 = vmul.f32 %v1151, 1.442695
        %v1161 = vpow.pop %v1160
        %v1162 = vmul.f32 %v1152, 1.442695
        %v1163 = vpow.pop %v1162
        %v1164 = vmul.f32 %v1153, 1.442695
        %v1165 = vpow.pop %v1164
        %v1166 = vmul.f32 %v1154, 1.442695
        %v1167 = vpow.pop %v1166
        %v1168 = vmul.f32 %v1155, 1.442695
        %v1169 = vpow.pop %v1168
        %v1170 = vmul.f32 %v1156, 1.442695
        %v1171 = vpow.pop %v1170
        %v1172 = vmul.f32 %v1157, 1.442695
        %v1173 = vpow.pop %v1172
        %v1174 = vsel %vm830, %v1159, 0.0
        %1175 = vadd.xlane.f32.xlu0 %v1174
        %v1176 = vpop.xlane.xlu0 %1175
        %v1177 = vsel %vm830, %v1161, 0.0
        %1178 = vadd.xlane.f32.xlu0 %v1177
        %v1179 = vpop.xlane.xlu0 %1178
        %v1180 = vsel %vm830, %v1163, 0.0
        %1181 = vadd.xlane.f32.xlu0 %v1180
        %v1182 = vpop.xlane.xlu0 %1181
        %v1183 = vsel %vm830, %v1165, 0.0
        %1184 = vadd.xlane.f32.xlu0 %v1183
        %v1185 = vpop.xlane.xlu0 %1184
        %v1186 = vsel %vm830, %v1167, 0.0
        %1187 = vadd.xlane.f32.xlu0 %v1186
        %v1188 = vpop.xlane.xlu0 %1187
        %v1189 = vsel %vm830, %v1169, 0.0
        %1190 = vadd.xlane.f32.xlu0 %v1189
        %v1191 = vpop.xlane.xlu0 %1190
        %v1192 = vsel %vm830, %v1171, 0.0
        %1193 = vadd.xlane.f32.xlu0 %v1192
        %v1194 = vpop.xlane.xlu0 %1193
        %v1195 = vsel %vm830, %v1173, 0.0
        %1196 = vadd.xlane.f32.xlu0 %v1195
        %v1197 = vpop.xlane.xlu0 %1196
        %v1198 = vrcp.pop %v1176
        %v1199 = vrcp.pop %v1179
        %v1200 = vrcp.pop %v1182
        %v1201 = vrcp.pop %v1185
        %v1202 = vrcp.pop %v1188
        %v1203 = vrcp.pop %v1191
        %v1204 = vrcp.pop %v1194
        %v1205 = vrcp.pop %v1197
        %v1206 = vmul.f32 %v1159, %v1198
        %v1207 = vmul.f32 %v1161, %v1199
        %v1208 = vmul.f32 %v1163, %v1200
        %v1209 = vmul.f32 %v1165, %v1201
        %v1210 = vmul.f32 %v1167, %v1202
        %v1211 = vmul.f32 %v1169, %v1203
        %v1212 = vmul.f32 %v1171, %v1204
        %v1213 = vmul.f32 %v1173, %v1205
        %v1214 = vpack.c.bf16 %v1206, %v1206
        %v1215 = vpack.c.bf16 %v1207, %v1207
        %v1216 = vpack.c.bf16 %v1208, %v1208
        %v1217 = vpack.c.bf16 %v1209, %v1209
        %v1218 = vpack.c.bf16 %v1210, %v1210
        %v1219 = vpack.c.bf16 %v1211, %v1211
        %v1220 = vpack.c.bf16 %v1212, %v1212
        %v1221 = vpack.c.bf16 %v1213, %v1213
        %v1224 = vunpack.c.l.b16 %v1214
        %v1225 = vunpack.c.l.b16 %v1215
        %v1226 = vpack.c.b16 %v1225, %v1224
        %1227 = vrot.lane.b32.xlu0 %v710, 56
        %v1228 = vpop.permute.xlu0 %1227
        %v1231 = vsel %vm830, %v1226, 0
        %1233 = vmatpush.bf16.msra.mxu0 0
        %1234 = vmatpush.bf16.msra.mxu0 0
        %1235 = vmatpush.bf16.msra.mxu0 0
        %1236 = vmatpush.bf16.msra.mxu0 0
        %1237 = vmatpush.bf16.msra.mxu0 0
        %1238 = vmatpush.bf16.msra.mxu0 0
        %1239 = vmatpush.bf16.msra.mxu0 0
        %1240 = vmatpush.bf16.msra.mxu0 %v1228
        %1241 = vmatmul.bf16.gmra.mxu0 %v1231
        %v1242 = vpop.f32.mrf.mxu0
        %v1243 = vadd.f32 0.0, %v1242
        %v1244 = vpop.f32.mrf.mxu0
        %v1245 = vadd.f32 0.0, %v1244
        %1246 = vdwg.mxu0
        %v1249 = vunpack.c.l.b16 %v1216
        %v1250 = vunpack.c.l.b16 %v1217
        %v1251 = vpack.c.b16 %v1250, %v1249
        %1252 = vrot.lane.b32.xlu0 %v743, 56
        %v1253 = vpop.permute.xlu0 %1252
        %v1256 = vsel %vm830, %v1251, 0
        %1258 = vmatpush.bf16.msra.mxu0 0
        %1259 = vmatpush.bf16.msra.mxu0 0
        %1260 = vmatpush.bf16.msra.mxu0 0
        %1261 = vmatpush.bf16.msra.mxu0 0
        %1262 = vmatpush.bf16.msra.mxu0 0
        %1263 = vmatpush.bf16.msra.mxu0 0
        %1264 = vmatpush.bf16.msra.mxu0 0
        %1265 = vmatpush.bf16.msra.mxu0 %v1253
        %1266 = vmatmul.bf16.gmra.mxu0 %v1256
        %v1267 = vpop.f32.mrf.mxu0
        %v1268 = vadd.f32 0.0, %v1267
        %v1269 = vpop.f32.mrf.mxu0
        %v1270 = vadd.f32 0.0, %v1269
        %1271 = vdwg.mxu0
        %v1274 = vunpack.c.l.b16 %v1218
        %v1275 = vunpack.c.l.b16 %v1219
        %v1276 = vpack.c.b16 %v1275, %v1274
        %1277 = vrot.lane.b32.xlu0 %v775, 56
        %v1278 = vpop.permute.xlu0 %1277
        %v1281 = vsel %vm830, %v1276, 0
        %1283 = vmatpush.bf16.msra.mxu0 0
        %1284 = vmatpush.bf16.msra.mxu0 0
        %1285 = vmatpush.bf16.msra.mxu0 0
        %1286 = vmatpush.bf16.msra.mxu0 0
        %1287 = vmatpush.bf16.msra.mxu0 0
        %1288 = vmatpush.bf16.msra.mxu0 0
        %1289 = vmatpush.bf16.msra.mxu0 0
        %1290 = vmatpush.bf16.msra.mxu0 %v1278
        %1291 = vmatmul.bf16.gmra.mxu0 %v1281
        %v1292 = vpop.f32.mrf.mxu0
        %v1293 = vadd.f32 0.0, %v1292
        %v1294 = vpop.f32.mrf.mxu0
        %v1295 = vadd.f32 0.0, %v1294
        %1296 = vdwg.mxu0
        %v1299 = vunpack.c.l.b16 %v1220
        %v1300 = vunpack.c.l.b16 %v1221
        %v1301 = vpack.c.b16 %v1300, %v1299
        %1302 = vrot.lane.b32.xlu0 %v807, 56
        %v1303 = vpop.permute.xlu0 %1302
        %v1306 = vsel %vm830, %v1301, 0
        %1308 = vmatpush.bf16.msra.mxu0 0
        %1309 = vmatpush.bf16.msra.mxu0 0
        %1310 = vmatpush.bf16.msra.mxu0 0
        %1311 = vmatpush.bf16.msra.mxu0 0
        %1312 = vmatpush.bf16.msra.mxu0 0
        %1313 = vmatpush.bf16.msra.mxu0 0
        %1314 = vmatpush.bf16.msra.mxu0 0
        %1315 = vmatpush.bf16.msra.mxu0 %v1303
        %1316 = vmatmul.bf16.gmra.mxu0 %v1306
        %v1317 = vpop.f32.mrf.mxu0
        %v1318 = vadd.f32 0.0, %v1317
        %v1319 = vpop.f32.mrf.mxu0
        %v1320 = vadd.f32 0.0, %v1319
        %1321 = vdwg.mxu0
        %s1322 = scalar_lea.vmem [#allocation10], 32
        %v1323 = vld [vmem:[%s1322] sm:$0xff]
        %v1324 = vld [vmem:[%s1322 + $0x8] sm:$0xff]
        %1325 = vrot.lane.b32.xlu0 %v705, 112
        %v1326 = vpop.permute.xlu0 %1325
        %1327 = vrot.lane.b32.xlu0 %v710, 80
        %v1328 = vpop.permute.xlu0 %1327
        %v1330 = vsel %vm713, %v1326, 0
        %v1333 = vsel %vm713, %v1328, 0
        %1335 = vmatpush.bf16.xpose.msra.mxu0 0
        %1336 = vmatpush.bf16.xpose.msra.mxu0 0
        %1337 = vmatpush.bf16.xpose.msra.mxu0 0
        %1338 = vmatpush.bf16.xpose.msra.mxu0 0
        %1339 = vmatpush.bf16.xpose.msra.mxu0 0
        %1340 = vmatpush.bf16.xpose.msra.mxu0 0
        %1341 = vmatpush.bf16.xpose.msra.mxu0 0
        %1342 = vmatpush.bf16.xpose.msra.mxu0 %v1333
        %1343 = vmatmul.bf16.gmra.mxu0 %v1330
        %v1344 = vpop.f32.mrf.mxu0
        %v1345 = vadd.f32 %v1323, %v1344
        %v1346 = vpop.f32.mrf.mxu0
        %v1347 = vadd.f32 %v1324, %v1346
        %1348 = vdwg.mxu0
        %1349 = vrot.lane.b32.xlu0 %v738, 112
        %v1350 = vpop.permute.xlu0 %1349
        %1351 = vrot.lane.b32.xlu0 %v743, 80
        %v1352 = vpop.permute.xlu0 %1351
        %v1354 = vsel %vm713, %v1350, 0
        %v1357 = vsel %vm713, %v1352, 0
        %1359 = vmatpush.bf16.xpose.msra.mxu0 0
        %1360 = vmatpush.bf16.xpose.msra.mxu0 0
        %1361 = vmatpush.bf16.xpose.msra.mxu0 0
        %1362 = vmatpush.bf16.xpose.msra.mxu0 0
        %1363 = vmatpush.bf16.xpose.msra.mxu0 0
        %1364 = vmatpush.bf16.xpose.msra.mxu0 0
        %1365 = vmatpush.bf16.xpose.msra.mxu0 0
        %1366 = vmatpush.bf16.xpose.msra.mxu0 %v1357
        %1367 = vmatmul.bf16.gmra.mxu0 %v1354
        %v1368 = vpop.f32.mrf.mxu0
        %v1369 = vadd.f32 %v1323, %v1368
        %v1370 = vpop.f32.mrf.mxu0
        %v1371 = vadd.f32 %v1324, %v1370
        %1372 = vdwg.mxu0
        %1373 = vrot.lane.b32.xlu0 %v770, 112
        %v1374 = vpop.permute.xlu0 %1373
        %1375 = vrot.lane.b32.xlu0 %v775, 80
        %v1376 = vpop.permute.xlu0 %1375
        %v1378 = vsel %vm713, %v1374, 0
        %v1381 = vsel %vm713, %v1376, 0
        %1383 = vmatpush.bf16.xpose.msra.mxu0 0
        %1384 = vmatpush.bf16.xpose.msra.mxu0 0
        %1385 = vmatpush.bf16.xpose.msra.mxu0 0
        %1386 = vmatpush.bf16.xpose.msra.mxu0 0
        %1387 = vmatpush.bf16.xpose.msra.mxu0 0
        %1388 = vmatpush.bf16.xpose.msra.mxu0 0
        %1389 = vmatpush.bf16.xpose.msra.mxu0 0
        %1390 = vmatpush.bf16.xpose.msra.mxu0 %v1381
        %1391 = vmatmul.bf16.gmra.mxu0 %v1378
        %v1392 = vpop.f32.mrf.mxu0
        %v1393 = vadd.f32 %v1323, %v1392
        %v1394 = vpop.f32.mrf.mxu0
        %v1395 = vadd.f32 %v1324, %v1394
        %1396 = vdwg.mxu0
        %1397 = vrot.lane.b32.xlu0 %v802, 112
        %v1398 = vpop.permute.xlu0 %1397
        %1399 = vrot.lane.b32.xlu0 %v807, 80
        %v1400 = vpop.permute.xlu0 %1399
        %v1402 = vsel %vm713, %v1398, 0
        %v1405 = vsel %vm713, %v1400, 0
        %1407 = vmatpush.bf16.xpose.msra.mxu0 0
        %1408 = vmatpush.bf16.xpose.msra.mxu0 0
        %1409 = vmatpush.bf16.xpose.msra.mxu0 0
        %1410 = vmatpush.bf16.xpose.msra.mxu0 0
        %1411 = vmatpush.bf16.xpose.msra.mxu0 0
        %1412 = vmatpush.bf16.xpose.msra.mxu0 0
        %1413 = vmatpush.bf16.xpose.msra.mxu0 0
        %1414 = vmatpush.bf16.xpose.msra.mxu0 %v1405
        %1415 = vmatmul.bf16.gmra.mxu0 %v1402
        %v1416 = vpop.f32.mrf.mxu0
        %v1417 = vadd.f32 %v1323, %v1416
        %v1418 = vpop.f32.mrf.mxu0
        %v1419 = vadd.f32 %v1324, %v1418
        %1420 = vdwg.mxu0
        %v1421 = vsel %vm830, %v1345, -inf
        %1422 = vmax.xlane.f32.xlu0 %v1421
        %v1423 = vpop.xlane.xlu0 %1422
        %v1424 = vsel %vm830, %v1347, -inf
        %1425 = vmax.xlane.f32.xlu0 %v1424
        %v1426 = vpop.xlane.xlu0 %1425
        %v1427 = vsel %vm830, %v1369, -inf
        %1428 = vmax.xlane.f32.xlu0 %v1427
        %v1429 = vpop.xlane.xlu0 %1428
        %v1430 = vsel %vm830, %v1371, -inf
        %1431 = vmax.xlane.f32.xlu0 %v1430
        %v1432 = vpop.xlane.xlu0 %1431
        %v1433 = vsel %vm830, %v1393, -inf
        %1434 = vmax.xlane.f32.xlu0 %v1433
        %v1435 = vpop.xlane.xlu0 %1434
        %v1436 = vsel %vm830, %v1395, -inf
        %1437 = vmax.xlane.f32.xlu0 %v1436
        %v1438 = vpop.xlane.xlu0 %1437
        %v1439 = vsel %vm830, %v1417, -inf
        %1440 = vmax.xlane.f32.xlu0 %v1439
        %v1441 = vpop.xlane.xlu0 %1440
        %v1442 = vsel %vm830, %v1419, -inf
        %1443 = vmax.xlane.f32.xlu0 %v1442
        %v1444 = vpop.xlane.xlu0 %1443
        %v1445 = vsub.f32 %v1345, %v1423
        %v1446 = vsub.f32 %v1347, %v1426
        %v1447 = vsub.f32 %v1369, %v1429
        %v1448 = vsub.f32 %v1371, %v1432
        %v1449 = vsub.f32 %v1393, %v1435
        %v1450 = vsub.f32 %v1395, %v1438
        %v1451 = vsub.f32 %v1417, %v1441
        %v1452 = vsub.f32 %v1419, %v1444
        %v1453 = vmul.f32 %v1445, 1.442695
        %v1454 = vpow.pop %v1453
        %v1455 = vmul.f32 %v1446, 1.442695
        %v1456 = vpow.pop %v1455
        %v1457 = vmul.f32 %v1447, 1.442695
        %v1458 = vpow.pop %v1457
        %v1459 = vmul.f32 %v1448, 1.442695
        %v1460 = vpow.pop %v1459
        %v1461 = vmul.f32 %v1449, 1.442695
        %v1462 = vpow.pop %v1461
        %v1463 = vmul.f32 %v1450, 1.442695
        %v1464 = vpow.pop %v1463
        %v1465 = vmul.f32 %v1451, 1.442695
        %v1466 = vpow.pop %v1465
        %v1467 = vmul.f32 %v1452, 1.442695
        %v1468 = vpow.pop %v1467
        %v1469 = vsel %vm830, %v1454, 0.0
        %1470 = vadd.xlane.f32.xlu0 %v1469
        %v1471 = vpop.xlane.xlu0 %1470
        %v1472 = vsel %vm830, %v1456, 0.0
        %1473 = vadd.xlane.f32.xlu0 %v1472
        %v1474 = vpop.xlane.xlu0 %1473
        %v1475 = vsel %vm830, %v1458, 0.0
        %1476 = vadd.xlane.f32.xlu0 %v1475
        %v1477 = vpop.xlane.xlu0 %1476
        %v1478 = vsel %vm830, %v1460, 0.0
        %1479 = vadd.xlane.f32.xlu0 %v1478
        %v1480 = vpop.xlane.xlu0 %1479
        %v1481 = vsel %vm830, %v1462, 0.0
        %1482 = vadd.xlane.f32.xlu0 %v1481
        %v1483 = vpop.xlane.xlu0 %1482
        %v1484 = vsel %vm830, %v1464, 0.0
        %1485 = vadd.xlane.f32.xlu0 %v1484
        %v1486 = vpop.xlane.xlu0 %1485
        %v1487 = vsel %vm830, %v1466, 0.0
        %1488 = vadd.xlane.f32.xlu0 %v1487
        %v1489 = vpop.xlane.xlu0 %1488
        %v1490 = vsel %vm830, %v1468, 0.0
        %1491 = vadd.xlane.f32.xlu0 %v1490
        %v1492 = vpop.xlane.xlu0 %1491
        %v1493 = vrcp.pop %v1471
        %v1494 = vrcp.pop %v1474
        %v1495 = vrcp.pop %v1477
        %v1496 = vrcp.pop %v1480
        %v1497 = vrcp.pop %v1483
        %v1498 = vrcp.pop %v1486
        %v1499 = vrcp.pop %v1489
        %v1500 = vrcp.pop %v1492
        %v1501 = vmul.f32 %v1454, %v1493
        %v1502 = vmul.f32 %v1456, %v1494
        %v1503 = vmul.f32 %v1458, %v1495
        %v1504 = vmul.f32 %v1460, %v1496
        %v1505 = vmul.f32 %v1462, %v1497
        %v1506 = vmul.f32 %v1464, %v1498
        %v1507 = vmul.f32 %v1466, %v1499
        %v1508 = vmul.f32 %v1468, %v1500
        %v1509 = vpack.c.bf16 %v1501, %v1501
        %v1510 = vpack.c.bf16 %v1502, %v1502
        %v1511 = vpack.c.bf16 %v1503, %v1503
        %v1512 = vpack.c.bf16 %v1504, %v1504
        %v1513 = vpack.c.bf16 %v1505, %v1505
        %v1514 = vpack.c.bf16 %v1506, %v1506
        %v1515 = vpack.c.bf16 %v1507, %v1507
        %v1516 = vpack.c.bf16 %v1508, %v1508
        %v1519 = vunpack.c.l.b16 %v1509
        %v1520 = vunpack.c.l.b16 %v1510
        %v1521 = vpack.c.b16 %v1520, %v1519
        %1522 = vrot.lane.b32.xlu0 %v710, 48
        %v1523 = vpop.permute.xlu0 %1522
        %v1526 = vsel %vm830, %v1521, 0
        %1528 = vmatpush.bf16.msra.mxu0 0
        %1529 = vmatpush.bf16.msra.mxu0 0
        %1530 = vmatpush.bf16.msra.mxu0 0
        %1531 = vmatpush.bf16.msra.mxu0 0
        %1532 = vmatpush.bf16.msra.mxu0 0
        %1533 = vmatpush.bf16.msra.mxu0 0
        %1534 = vmatpush.bf16.msra.mxu0 0
        %1535 = vmatpush.bf16.msra.mxu0 %v1523
        %1536 = vmatmul.bf16.gmra.mxu0 %v1526
        %v1537 = vpop.f32.mrf.mxu0
        %v1538 = vadd.f32 0.0, %v1537
        %v1539 = vpop.f32.mrf.mxu0
        %v1540 = vadd.f32 0.0, %v1539
        %1541 = vdwg.mxu0
        %v1544 = vunpack.c.l.b16 %v1511
        %v1545 = vunpack.c.l.b16 %v1512
        %v1546 = vpack.c.b16 %v1545, %v1544
        %1547 = vrot.lane.b32.xlu0 %v743, 48
        %v1548 = vpop.permute.xlu0 %1547
        %v1551 = vsel %vm830, %v1546, 0
        %1553 = vmatpush.bf16.msra.mxu0 0
        %1554 = vmatpush.bf16.msra.mxu0 0
        %1555 = vmatpush.bf16.msra.mxu0 0
        %1556 = vmatpush.bf16.msra.mxu0 0
        %1557 = vmatpush.bf16.msra.mxu0 0
        %1558 = vmatpush.bf16.msra.mxu0 0
        %1559 = vmatpush.bf16.msra.mxu0 0
        %1560 = vmatpush.bf16.msra.mxu0 %v1548
        %1561 = vmatmul.bf16.gmra.mxu0 %v1551
        %v1562 = vpop.f32.mrf.mxu0
        %v1563 = vadd.f32 0.0, %v1562
        %v1564 = vpop.f32.mrf.mxu0
        %v1565 = vadd.f32 0.0, %v1564
        %1566 = vdwg.mxu0
        %v1569 = vunpack.c.l.b16 %v1513
        %v1570 = vunpack.c.l.b16 %v1514
        %v1571 = vpack.c.b16 %v1570, %v1569
        %1572 = vrot.lane.b32.xlu0 %v775, 48
        %v1573 = vpop.permute.xlu0 %1572
        %v1576 = vsel %vm830, %v1571, 0
        %1578 = vmatpush.bf16.msra.mxu0 0
        %1579 = vmatpush.bf16.msra.mxu0 0
        %1580 = vmatpush.bf16.msra.mxu0 0
        %1581 = vmatpush.bf16.msra.mxu0 0
        %1582 = vmatpush.bf16.msra.mxu0 0
        %1583 = vmatpush.bf16.msra.mxu0 0
        %1584 = vmatpush.bf16.msra.mxu0 0
        %1585 = vmatpush.bf16.msra.mxu0 %v1573
        %1586 = vmatmul.bf16.gmra.mxu0 %v1576
        %v1587 = vpop.f32.mrf.mxu0
        %v1588 = vadd.f32 0.0, %v1587
        %v1589 = vpop.f32.mrf.mxu0
        %v1590 = vadd.f32 0.0, %v1589
        %1591 = vdwg.mxu0
        %v1594 = vunpack.c.l.b16 %v1515
        %v1595 = vunpack.c.l.b16 %v1516
        %v1596 = vpack.c.b16 %v1595, %v1594
        %1597 = vrot.lane.b32.xlu0 %v807, 48
        %v1598 = vpop.permute.xlu0 %1597
        %v1601 = vsel %vm830, %v1596, 0
        %1603 = vmatpush.bf16.msra.mxu0 0
        %1604 = vmatpush.bf16.msra.mxu0 0
        %1605 = vmatpush.bf16.msra.mxu0 0
        %1606 = vmatpush.bf16.msra.mxu0 0
        %1607 = vmatpush.bf16.msra.mxu0 0
        %1608 = vmatpush.bf16.msra.mxu0 0
        %1609 = vmatpush.bf16.msra.mxu0 0
        %1610 = vmatpush.bf16.msra.mxu0 %v1598
        %1611 = vmatmul.bf16.gmra.mxu0 %v1601
        %v1612 = vpop.f32.mrf.mxu0
        %v1613 = vadd.f32 0.0, %v1612
        %v1614 = vpop.f32.mrf.mxu0
        %v1615 = vadd.f32 0.0, %v1614
        %1616 = vdwg.mxu0
        %s1617 = scalar_lea.vmem [#allocation10], 48
        %v1618 = vld [vmem:[%s1617] sm:$0xff]
        %v1619 = vld [vmem:[%s1617 + $0x8] sm:$0xff]
        %1620 = vrot.lane.b32.xlu0 %v705, 104
        %v1621 = vpop.permute.xlu0 %1620
        %1622 = vrot.lane.b32.xlu0 %v710, 72
        %v1623 = vpop.permute.xlu0 %1622
        %v1625 = vsel %vm713, %v1621, 0
        %v1628 = vsel %vm713, %v1623, 0
        %1630 = vmatpush.bf16.xpose.msra.mxu0 0
        %1631 = vmatpush.bf16.xpose.msra.mxu0 0
        %1632 = vmatpush.bf16.xpose.msra.mxu0 0
        %1633 = vmatpush.bf16.xpose.msra.mxu0 0
        %1634 = vmatpush.bf16.xpose.msra.mxu0 0
        %1635 = vmatpush.bf16.xpose.msra.mxu0 0
        %1636 = vmatpush.bf16.xpose.msra.mxu0 0
        %1637 = vmatpush.bf16.xpose.msra.mxu0 %v1628
        %1638 = vmatmul.bf16.gmra.mxu0 %v1625
        %v1639 = vpop.f32.mrf.mxu0
        %v1640 = vadd.f32 %v1618, %v1639
        %v1641 = vpop.f32.mrf.mxu0
        %v1642 = vadd.f32 %v1619, %v1641
        %1643 = vdwg.mxu0
        %1644 = vrot.lane.b32.xlu0 %v738, 104
        %v1645 = vpop.permute.xlu0 %1644
        %1646 = vrot.lane.b32.xlu0 %v743, 72
        %v1647 = vpop.permute.xlu0 %1646
        %v1649 = vsel %vm713, %v1645, 0
        %v1652 = vsel %vm713, %v1647, 0
        %1654 = vmatpush.bf16.xpose.msra.mxu0 0
        %1655 = vmatpush.bf16.xpose.msra.mxu0 0
        %1656 = vmatpush.bf16.xpose.msra.mxu0 0
        %1657 = vmatpush.bf16.xpose.msra.mxu0 0
        %1658 = vmatpush.bf16.xpose.msra.mxu0 0
        %1659 = vmatpush.bf16.xpose.msra.mxu0 0
        %1660 = vmatpush.bf16.xpose.msra.mxu0 0
        %1661 = vmatpush.bf16.xpose.msra.mxu0 %v1652
        %1662 = vmatmul.bf16.gmra.mxu0 %v1649
        %v1663 = vpop.f32.mrf.mxu0
        %v1664 = vadd.f32 %v1618, %v1663
        %v1665 = vpop.f32.mrf.mxu0
        %v1666 = vadd.f32 %v1619, %v1665
        %1667 = vdwg.mxu0
        %1668 = vrot.lane.b32.xlu0 %v770, 104
        %v1669 = vpop.permute.xlu0 %1668
        %1670 = vrot.lane.b32.xlu0 %v775, 72
        %v1671 = vpop.permute.xlu0 %1670
        %v1673 = vsel %vm713, %v1669, 0
        %v1676 = vsel %vm713, %v1671, 0
        %1678 = vmatpush.bf16.xpose.msra.mxu0 0
        %1679 = vmatpush.bf16.xpose.msra.mxu0 0
        %1680 = vmatpush.bf16.xpose.msra.mxu0 0
        %1681 = vmatpush.bf16.xpose.msra.mxu0 0
        %1682 = vmatpush.bf16.xpose.msra.mxu0 0
        %1683 = vmatpush.bf16.xpose.msra.mxu0 0
        %1684 = vmatpush.bf16.xpose.msra.mxu0 0
        %1685 = vmatpush.bf16.xpose.msra.mxu0 %v1676
        %1686 = vmatmul.bf16.gmra.mxu0 %v1673
        %v1687 = vpop.f32.mrf.mxu0
        %v1688 = vadd.f32 %v1618, %v1687
        %v1689 = vpop.f32.mrf.mxu0
        %v1690 = vadd.f32 %v1619, %v1689
        %1691 = vdwg.mxu0
        %1692 = vrot.lane.b32.xlu0 %v802, 104
        %v1693 = vpop.permute.xlu0 %1692
        %1694 = vrot.lane.b32.xlu0 %v807, 72
        %v1695 = vpop.permute.xlu0 %1694
        %v1697 = vsel %vm713, %v1693, 0
        %v1700 = vsel %vm713, %v1695, 0
        %1702 = vmatpush.bf16.xpose.msra.mxu0 0
        %1703 = vmatpush.bf16.xpose.msra.mxu0 0
        %1704 = vmatpush.bf16.xpose.msra.mxu0 0
        %1705 = vmatpush.bf16.xpose.msra.mxu0 0
        %1706 = vmatpush.bf16.xpose.msra.mxu0 0
        %1707 = vmatpush.bf16.xpose.msra.mxu0 0
        %1708 = vmatpush.bf16.xpose.msra.mxu0 0
        %1709 = vmatpush.bf16.xpose.msra.mxu0 %v1700
        %1710 = vmatmul.bf16.gmra.mxu0 %v1697
        %v1711 = vpop.f32.mrf.mxu0
        %v1712 = vadd.f32 %v1618, %v1711
        %v1713 = vpop.f32.mrf.mxu0
        %v1714 = vadd.f32 %v1619, %v1713
        %1715 = vdwg.mxu0
        %v1716 = vsel %vm830, %v1640, -inf
        %1717 = vmax.xlane.f32.xlu0 %v1716
        %v1718 = vpop.xlane.xlu0 %1717
        %v1719 = vsel %vm830, %v1642, -inf
        %1720 = vmax.xlane.f32.xlu0 %v1719
        %v1721 = vpop.xlane.xlu0 %1720
        %v1722 = vsel %vm830, %v1664, -inf
        %1723 = vmax.xlane.f32.xlu0 %v1722
        %v1724 = vpop.xlane.xlu0 %1723
        %v1725 = vsel %vm830, %v1666, -inf
        %1726 = vmax.xlane.f32.xlu0 %v1725
        %v1727 = vpop.xlane.xlu0 %1726
        %v1728 = vsel %vm830, %v1688, -inf
        %1729 = vmax.xlane.f32.xlu0 %v1728
        %v1730 = vpop.xlane.xlu0 %1729
        %v1731 = vsel %vm830, %v1690, -inf
        %1732 = vmax.xlane.f32.xlu0 %v1731
        %v1733 = vpop.xlane.xlu0 %1732
        %v1734 = vsel %vm830, %v1712, -inf
        %1735 = vmax.xlane.f32.xlu0 %v1734
        %v1736 = vpop.xlane.xlu0 %1735
        %v1737 = vsel %vm830, %v1714, -inf
        %1738 = vmax.xlane.f32.xlu0 %v1737
        %v1739 = vpop.xlane.xlu0 %1738
        %v1740 = vsub.f32 %v1640, %v1718
        %v1741 = vsub.f32 %v1642, %v1721
        %v1742 = vsub.f32 %v1664, %v1724
        %v1743 = vsub.f32 %v1666, %v1727
        %v1744 = vsub.f32 %v1688, %v1730
        %v1745 = vsub.f32 %v1690, %v1733
        %v1746 = vsub.f32 %v1712, %v1736
        %v1747 = vsub.f32 %v1714, %v1739
        %v1748 = vmul.f32 %v1740, 1.442695
        %v1749 = vpow.pop %v1748
        %v1750 = vmul.f32 %v1741, 1.442695
        %v1751 = vpow.pop %v1750
        %v1752 = vmul.f32 %v1742, 1.442695
        %v1753 = vpow.pop %v1752
        %v1754 = vmul.f32 %v1743, 1.442695
        %v1755 = vpow.pop %v1754
        %v1756 = vmul.f32 %v1744, 1.442695
        %v1757 = vpow.pop %v1756
        %v1758 = vmul.f32 %v1745, 1.442695
        %v1759 = vpow.pop %v1758
        %v1760 = vmul.f32 %v1746, 1.442695
        %v1761 = vpow.pop %v1760
        %v1762 = vmul.f32 %v1747, 1.442695
        %v1763 = vpow.pop %v1762
        %v1764 = vsel %vm830, %v1749, 0.0
        %1765 = vadd.xlane.f32.xlu0 %v1764
        %v1766 = vpop.xlane.xlu0 %1765
        %v1767 = vsel %vm830, %v1751, 0.0
        %1768 = vadd.xlane.f32.xlu0 %v1767
        %v1769 = vpop.xlane.xlu0 %1768
        %v1770 = vsel %vm830, %v1753, 0.0
        %1771 = vadd.xlane.f32.xlu0 %v1770
        %v1772 = vpop.xlane.xlu0 %1771
        %v1773 = vsel %vm830, %v1755, 0.0
        %1774 = vadd.xlane.f32.xlu0 %v1773
        %v1775 = vpop.xlane.xlu0 %1774
        %v1776 = vsel %vm830, %v1757, 0.0
        %1777 = vadd.xlane.f32.xlu0 %v1776
        %v1778 = vpop.xlane.xlu0 %1777
        %v1779 = vsel %vm830, %v1759, 0.0
        %1780 = vadd.xlane.f32.xlu0 %v1779
        %v1781 = vpop.xlane.xlu0 %1780
        %v1782 = vsel %vm830, %v1761, 0.0
        %1783 = vadd.xlane.f32.xlu0 %v1782
        %v1784 = vpop.xlane.xlu0 %1783
        %v1785 = vsel %vm830, %v1763, 0.0
        %1786 = vadd.xlane.f32.xlu0 %v1785
        %v1787 = vpop.xlane.xlu0 %1786
        %v1788 = vrcp.pop %v1766
        %v1789 = vrcp.pop %v1769
        %v1790 = vrcp.pop %v1772
        %v1791 = vrcp.pop %v1775
        %v1792 = vrcp.pop %v1778
        %v1793 = vrcp.pop %v1781
        %v1794 = vrcp.pop %v1784
        %v1795 = vrcp.pop %v1787
        %v1796 = vmul.f32 %v1749, %v1788
        %v1797 = vmul.f32 %v1751, %v1789
        %v1798 = vmul.f32 %v1753, %v1790
        %v1799 = vmul.f32 %v1755, %v1791
        %v1800 = vmul.f32 %v1757, %v1792
        %v1801 = vmul.f32 %v1759, %v1793
        %v1802 = vmul.f32 %v1761, %v1794
        %v1803 = vmul.f32 %v1763, %v1795
        %v1804 = vpack.c.bf16 %v1796, %v1796
        %v1805 = vpack.c.bf16 %v1797, %v1797
        %v1806 = vpack.c.bf16 %v1798, %v1798
        %v1807 = vpack.c.bf16 %v1799, %v1799
        %v1808 = vpack.c.bf16 %v1800, %v1800
        %v1809 = vpack.c.bf16 %v1801, %v1801
        %v1810 = vpack.c.bf16 %v1802, %v1802
        %v1811 = vpack.c.bf16 %v1803, %v1803
        %v1814 = vunpack.c.l.b16 %v1804
        %v1815 = vunpack.c.l.b16 %v1805
        %v1816 = vpack.c.b16 %v1815, %v1814
        %1817 = vrot.lane.b32.xlu0 %v710, 40
        %v1818 = vpop.permute.xlu0 %1817
        %v1821 = vsel %vm830, %v1816, 0
        %1823 = vmatpush.bf16.msra.mxu0 0
        %1824 = vmatpush.bf16.msra.mxu0 0
        %1825 = vmatpush.bf16.msra.mxu0 0
        %1826 = vmatpush.bf16.msra.mxu0 0
        %1827 = vmatpush.bf16.msra.mxu0 0
        %1828 = vmatpush.bf16.msra.mxu0 0
        %1829 = vmatpush.bf16.msra.mxu0 0
        %1830 = vmatpush.bf16.msra.mxu0 %v1818
        %1831 = vmatmul.bf16.gmra.mxu0 %v1821
        %v1832 = vpop.f32.mrf.mxu0
        %v1833 = vadd.f32 0.0, %v1832
        %v1834 = vpop.f32.mrf.mxu0
        %v1835 = vadd.f32 0.0, %v1834
        %1836 = vdwg.mxu0
        %v1839 = vunpack.c.l.b16 %v1806
        %v1840 = vunpack.c.l.b16 %v1807
        %v1841 = vpack.c.b16 %v1840, %v1839
        %1842 = vrot.lane.b32.xlu0 %v743, 40
        %v1843 = vpop.permute.xlu0 %1842
        %v1846 = vsel %vm830, %v1841, 0
        %1848 = vmatpush.bf16.msra.mxu0 0
        %1849 = vmatpush.bf16.msra.mxu0 0
        %1850 = vmatpush.bf16.msra.mxu0 0
        %1851 = vmatpush.bf16.msra.mxu0 0
        %1852 = vmatpush.bf16.msra.mxu0 0
        %1853 = vmatpush.bf16.msra.mxu0 0
        %1854 = vmatpush.bf16.msra.mxu0 0
        %1855 = vmatpush.bf16.msra.mxu0 %v1843
        %1856 = vmatmul.bf16.gmra.mxu0 %v1846
        %v1857 = vpop.f32.mrf.mxu0
        %v1858 = vadd.f32 0.0, %v1857
        %v1859 = vpop.f32.mrf.mxu0
        %v1860 = vadd.f32 0.0, %v1859
        %1861 = vdwg.mxu0
        %v1864 = vunpack.c.l.b16 %v1808
        %v1865 = vunpack.c.l.b16 %v1809
        %v1866 = vpack.c.b16 %v1865, %v1864
        %1867 = vrot.lane.b32.xlu0 %v775, 40
        %v1868 = vpop.permute.xlu0 %1867
        %v1871 = vsel %vm830, %v1866, 0
        %1873 = vmatpush.bf16.msra.mxu0 0
        %1874 = vmatpush.bf16.msra.mxu0 0
        %1875 = vmatpush.bf16.msra.mxu0 0
        %1876 = vmatpush.bf16.msra.mxu0 0
        %1877 = vmatpush.bf16.msra.mxu0 0
        %1878 = vmatpush.bf16.msra.mxu0 0
        %1879 = vmatpush.bf16.msra.mxu0 0
        %1880 = vmatpush.bf16.msra.mxu0 %v1868
        %1881 = vmatmul.bf16.gmra.mxu0 %v1871
        %v1882 = vpop.f32.mrf.mxu0
        %v1883 = vadd.f32 0.0, %v1882
        %v1884 = vpop.f32.mrf.mxu0
        %v1885 = vadd.f32 0.0, %v1884
        %1886 = vdwg.mxu0
        %v1889 = vunpack.c.l.b16 %v1810
        %v1890 = vunpack.c.l.b16 %v1811
        %v1891 = vpack.c.b16 %v1890, %v1889
        %1892 = vrot.lane.b32.xlu0 %v807, 40
        %v1893 = vpop.permute.xlu0 %1892
        %v1896 = vsel %vm830, %v1891, 0
        %1898 = vmatpush.bf16.msra.mxu0 0
        %1899 = vmatpush.bf16.msra.mxu0 0
        %1900 = vmatpush.bf16.msra.mxu0 0
        %1901 = vmatpush.bf16.msra.mxu0 0
        %1902 = vmatpush.bf16.msra.mxu0 0
        %1903 = vmatpush.bf16.msra.mxu0 0
        %1904 = vmatpush.bf16.msra.mxu0 0
        %1905 = vmatpush.bf16.msra.mxu0 %v1893
        %1906 = vmatmul.bf16.gmra.mxu0 %v1896
        %v1907 = vpop.f32.mrf.mxu0
        %v1908 = vadd.f32 0.0, %v1907
        %v1909 = vpop.f32.mrf.mxu0
        %v1910 = vadd.f32 0.0, %v1909
        %1911 = vdwg.mxu0
        %1920 = vrot.lane.b32.xlu0 %v1243, 8
        %v1921 = vpop.permute.xlu0 %1920
        %1922 = vrot.lane.b32.xlu0 %v1245, 8
        %v1923 = vpop.permute.xlu0 %1922
        %1924 = vrot.lane.b32.xlu0 %v1268, 8
        %v1925 = vpop.permute.xlu0 %1924
        %1926 = vrot.lane.b32.xlu0 %v1270, 8
        %v1927 = vpop.permute.xlu0 %1926
        %1928 = vrot.lane.b32.xlu0 %v1293, 8
        %v1929 = vpop.permute.xlu0 %1928
        %1930 = vrot.lane.b32.xlu0 %v1295, 8
        %v1931 = vpop.permute.xlu0 %1930
        %1932 = vrot.lane.b32.xlu0 %v1318, 8
        %v1933 = vpop.permute.xlu0 %1932
        %1934 = vrot.lane.b32.xlu0 %v1320, 8
        %v1935 = vpop.permute.xlu0 %1934
        %1952 = vrot.lane.b32.xlu0 %v1538, 16
        %v1953 = vpop.permute.xlu0 %1952
        %1954 = vrot.lane.b32.xlu0 %v1540, 16
        %v1955 = vpop.permute.xlu0 %1954
        %1956 = vrot.lane.b32.xlu0 %v1563, 16
        %v1957 = vpop.permute.xlu0 %1956
        %1958 = vrot.lane.b32.xlu0 %v1565, 16
        %v1959 = vpop.permute.xlu0 %1958
        %1960 = vrot.lane.b32.xlu0 %v1588, 16
        %v1961 = vpop.permute.xlu0 %1960
        %1962 = vrot.lane.b32.xlu0 %v1590, 16
        %v1963 = vpop.permute.xlu0 %1962
        %1964 = vrot.lane.b32.xlu0 %v1613, 16
        %v1965 = vpop.permute.xlu0 %1964
        %1966 = vrot.lane.b32.xlu0 %v1615, 16
        %v1967 = vpop.permute.xlu0 %1966
        %1984 = vrot.lane.b32.xlu0 %v1833, 24
        %v1985 = vpop.permute.xlu0 %1984
        %1986 = vrot.lane.b32.xlu0 %v1835, 24
        %v1987 = vpop.permute.xlu0 %1986
        %1988 = vrot.lane.b32.xlu0 %v1858, 24
        %v1989 = vpop.permute.xlu0 %1988
        %1990 = vrot.lane.b32.xlu0 %v1860, 24
        %v1991 = vpop.permute.xlu0 %1990
        %1992 = vrot.lane.b32.xlu0 %v1883, 24
        %v1993 = vpop.permute.xlu0 %1992
        %1994 = vrot.lane.b32.xlu0 %v1885, 24
        %v1995 = vpop.permute.xlu0 %1994
        %1996 = vrot.lane.b32.xlu0 %v1908, 24
        %v1997 = vpop.permute.xlu0 %1996
        %1998 = vrot.lane.b32.xlu0 %v1910, 24
        %v1999 = vpop.permute.xlu0 %1998
        %v2008 = vsel %vm713, %v948, %v1921
        %v2009 = vsel %vm713, %v950, %v1923
        %v2010 = vsel %vm713, %v973, %v1925
        %v2011 = vsel %vm713, %v975, %v1927
        %v2012 = vsel %vm713, %v998, %v1929
        %v2013 = vsel %vm713, %v1000, %v1931
        %v2014 = vsel %vm713, %v1023, %v1933
        %v2015 = vsel %vm713, %v1025, %v1935
        %v2016 = vsel %vm830, %v2008, %v1953
        %v2017 = vsel %vm830, %v2009, %v1955
        %v2018 = vsel %vm830, %v2010, %v1957
        %v2019 = vsel %vm830, %v2011, %v1959
        %v2020 = vsel %vm830, %v2012, %v1961
        %v2021 = vsel %vm830, %v2013, %v1963
        %v2022 = vsel %vm830, %v2014, %v1965
        %v2023 = vsel %vm830, %v2015, %v1967
        %vm2024 = vcmask 195584
        %v2025 = vsel %vm2024, %v2016, %v1985
        %v2026 = vsel %vm2024, %v2017, %v1987
        %v2027 = vsel %vm2024, %v2018, %v1989
        %v2028 = vsel %vm2024, %v2019, %v1991
        %v2029 = vsel %vm2024, %v2020, %v1993
        %v2030 = vsel %vm2024, %v2021, %v1995
        %v2031 = vsel %vm2024, %v2022, %v1997
        %v2032 = vsel %vm2024, %v2023, %v1999
        %v2033 = vpack.c.bf16 %v2026, %v2025
        %v2034 = vpack.c.bf16 %v2028, %v2027
        %v2035 = vpack.c.bf16 %v2030, %v2029
        %v2036 = vpack.c.bf16 %v2032, %v2031
        %v2037 = vld [vmem:[#allocation8] sm:$0xf]
        %v2038 = vld [vmem:[#allocation8 + $0x4] sm:$0xf]
        %v2039 = vld [vmem:[#allocation8 + $0x8] sm:$0xf]
        %v2040 = vld [vmem:[#allocation8 + $0xc] sm:$0xf]
        %v2041 = vld [vmem:[%s6] sm:$0x1]
        %v2043 = vperm.slane %v2041, 0
        %v2049 = vunpack.c.l.b16 %v2037
        %v2050 = vunpack.c.l.b16 %v2038
        %v2051 = vunpack.c.l.b16 %v2039
        %v2052 = vunpack.c.l.b16 %v2040
        %v2053 = vpack.c.b16 %v2050, %v2049
        %v2054 = vpack.c.b16 %v2052, %v2051
        %v2058 = vsel %vm402, %v2033, 0
        %v2061 = vsel %vm402, %v2034, 0
        %v2064 = vsel %vm402, %v2035, 0
        %v2067 = vsel %vm402, %v2036, 0
        %2069 = vmatpush.bf16.msra.mxu0 0
        %2070 = vmatpush.bf16.msra.mxu0 0
        %2071 = vmatpush.bf16.msra.mxu0 0
        %2072 = vmatpush.bf16.msra.mxu0 0
        %2073 = vmatpush.bf16.msra.mxu0 0
        %2074 = vmatpush.bf16.msra.mxu0 0
        %2075 = vmatpush.bf16.msra.mxu0 %v2054
        %2076 = vmatpush.bf16.msra.mxu0 %v2053
        %2077 = vmatmul.bf16.gmra.mxu0 %v2058
        %v2078 = vpop.f32.mrf.mxu0
        %v2079 = vadd.f32 %v2043, %v2078
        %v2080 = vpop.f32.mrf.mxu0
        %v2081 = vadd.f32 %v2043, %v2080
        %2082 = vmatmul.bf16.gmra.mxu0 %v2061
        %v2083 = vpop.f32.mrf.mxu0
        %v2084 = vadd.f32 %v2043, %v2083
        %v2085 = vpop.f32.mrf.mxu0
        %v2086 = vadd.f32 %v2043, %v2085
        %2087 = vmatmul.bf16.gmra.mxu0 %v2064
        %v2088 = vpop.f32.mrf.mxu0
        %v2089 = vadd.f32 %v2043, %v2088
        %v2090 = vpop.f32.mrf.mxu0
        %v2091 = vadd.f32 %v2043, %v2090
        %2092 = vmatmul.bf16.gmra.mxu0 %v2067
        %v2093 = vpop.f32.mrf.mxu0
        %v2094 = vadd.f32 %v2043, %v2093
        %v2095 = vpop.f32.mrf.mxu0
        %v2096 = vadd.f32 %v2043, %v2095
        %2097 = vdwg.mxu0
        %2098 = vst.msk [vmem:[%s390] sm:$0xff] %vm402, %v2079
        %2099 = vst.msk [vmem:[%s390 + $0x8] sm:$0xff] %vm402, %v2081
        %2100 = vst.msk [vmem:[%s390 + $0x10] sm:$0xff] %vm402, %v2084
        %2101 = vst.msk [vmem:[%s390 + $0x18] sm:$0xff] %vm402, %v2086
        %2102 = vst.msk [vmem:[%s390 + $0x20] sm:$0xff] %vm402, %v2089
        %2103 = vst.msk [vmem:[%s390 + $0x28] sm:$0xff] %vm402, %v2091
        %2104 = vst.msk [vmem:[%s390 + $0x30] sm:$0xff] %vm402, %v2094
        %2105 = vst.msk [vmem:[%s390 + $0x38] sm:$0xff] %vm402, %v2096
        %s2106 = sand.u32 %s208, 1
        %s2107 = scalar_lea.sflag [#allocation4], %s2106
        %s2108 = sand.u32 %s208, 1
        %s2109 = smul.addr %s2108, 64
        %s2110 = scalar_lea.vmem [#allocation11], %s2109
        // Predicated region
        $region73: #{tpu_custom_call.1} parent=51 // pred_check
          %p2111 = pneg %p218
        $region74: #{tpu_custom_call.1} parent=51 // pred_check_branch
          %2113 = sbr.rel (%p2111) target = $region76
        $region75: #{tpu_custom_call.1} parent=51 // pred_region
          %s2114 = smul.u32 4, %s27
          %2116 = vsyncadd %s2107, 0
          %s2117 = smul.addr %s2114, 2
          %s2118 = smul.addr %s2117, 8
          %s2119 = scalar_lea.hbm %s8, %s2118
          %s2120 = sshll.u32 %s2110, 4
          %s2121 = int_to_ptr.vmem [resolvable:$true] %s2120
          %s2122 = sshll.u32 %s2119, 4
          %s2123 = int_to_ptr.hbm [resolvable:$true] %s2122
          %2128 = dma.vmem_to_hbm [thread:$0]  %s2121, 1024, %s2123, %s2107, 128, 128, 8
        $region76: #{tpu_custom_call.1} parent=51 // pred_fallthru
          _
      $region52: #{tpu_custom_call.1} parent=5 // pred_fallthru
        _
      %p2129 = scmp.le.s32.totalorder 2, %s22
      // Predicated region
      $region77: #{tpu_custom_call.1} parent=5 // pred_check
        %p2130 = pneg %p2129
      $region78: #{tpu_custom_call.1} parent=5 // pred_check_branch
        %2132 = sbr.rel (%p2130) target = $region80
      $region79: #{tpu_custom_call.1} parent=5 // pred_region
        %s2133 = ssub.s32 %s22, 2
        // Predicated region
        $region81: #{tpu_custom_call.1} parent=79 // pred_check
          %p2134 = pneg %p224
        $region82: #{tpu_custom_call.1} parent=79 // pred_check_branch
          %2136 = sbr.rel (%p2134) target = $region84
        $region83: #{tpu_custom_call.1} parent=79 // pred_region
          %s2137 = sand.u32 %s209, 1
          %s2138 = scalar_lea.sflag [#allocation4], %s2137
          %s2139 = sand.u32 %s209, 1
          %s2140 = smul.addr %s2139, 64
          %s2141 = scalar_lea.vmem [#allocation11], %s2140
          %2143 = dma.done %s2138, 1024
        $region84: #{tpu_custom_call.1} parent=79 // pred_fallthru
          _
      $region80: #{tpu_custom_call.1} parent=5 // pred_fallthru
        _
    $region6: #{tpu_custom_call.1} parent=1 // loop_footer
      %s26 = sadd.s32 1, %s22
    $region7: #{tpu_custom_call.1} parent=1 // loop_footer_branch
      %21 = sbr.rel target = $region3
    $region8: #{tpu_custom_call.1} parent=1 // loop_exit
      _
    %2144 = vsyncpa [#allocation3], 1
    %s2145 = scalar_lea.sflag [#allocation3], 1
    %2146 = vsyncpa %s2145, 1
    %2147 = vsyncpa [#allocation6], 1
    %2148 = vsyncpa [#allocation9], 1
    %2149 = vsyncpa [#allocation4], 1
    %s2150 = scalar_lea.sflag [#allocation4], 1
    %2151 = vsyncpa %s2150, 1

</llo_original>
